<compile_context>
chip_gen: v5e
topology: v5e:2x2
jax: 0.10.0
libtpu: 0.0.40
codegen_flags: <defaults>
</compile_context>

<pallas_src>
import jax
import jax.numpy as jnp
from jax import lax
from jax.experimental import pallas as pl

# ---- "args" of the PyTorch Model (small, deterministic) --------------------
BATCH = 2
NUM_INPUTS = 8
NUM_OUTPUTS = 8
CONTROLLER_SIZE = 32
NUM_READ_HEADS = 1
NUM_WRITE_HEADS = 1
MEM_N = 16                 # memory_size
MEM_M = 8                  # word_size

CTRL_IN = NUM_INPUTS + MEM_M * NUM_READ_HEADS
READ_COLS = MEM_M + 6                       # k, beta, g, s(3), gamma
WRITE_COLS = 3 * MEM_M + 6                  # k, beta, g, s(3), gamma, e, a
HEADS_COLS = NUM_READ_HEADS * READ_COLS + NUM_WRITE_HEADS * WRITE_COLS
NUM_HEADS = NUM_READ_HEADS + NUM_WRITE_HEADS


# ---- in-kernel helpers ------------------------------------------------------
def _softplus(x):
    # numerically stable softplus using only exp/log/abs/max (VPU + EUP)
    return jnp.maximum(x, 0.0) + jnp.log(1.0 + jnp.exp(-jnp.abs(x)))


# ---- the fused NTM-step kernel ----------------------------------------------
def _ntm_step_kernel(x_ref, reads_ref, h_ref, c_ref, wprev_ref, mem_ref,
                     lstm_w_ref, lstm_b_ref, heads_w_ref, heads_b_ref,
                     fc_w_ref, fc_b_ref,
                     o_ref, reads_out_ref, h_out_ref, c_out_ref,
                     w_out_ref, mem_out_ref):
    H, N, M = CONTROLLER_SIZE, MEM_N, MEM_M

    mem = mem_ref[...]                                   # (B, N, M)
    h_prev = h_ref[...]
    c_prev = c_ref[...]

    # ---- LSTM controller: single stacked matmul [x | r_prev | h_prev] @ W --
    xi = jnp.concatenate([x_ref[...], reads_ref[...], h_prev], axis=1)
    gates = (jnp.dot(xi, lstm_w_ref[...], preferred_element_type=jnp.float32)
             + lstm_b_ref[...])
    i_g = jax.nn.sigmoid(gates[:, 0 * H:1 * H])
    f_g = jax.nn.sigmoid(gates[:, 1 * H:2 * H])
    g_g = jnp.tanh(gates[:, 2 * H:3 * H])
    o_g = jax.nn.sigmoid(gates[:, 3 * H:4 * H])
    c_new = f_g * c_prev + i_g * g_g
    h = o_g * jnp.tanh(c_new)
    h_out_ref[...] = h
    c_out_ref[...] = c_new

    # ---- one stacked projection for all read + write heads -----------------
    raw = (jnp.dot(h, heads_w_ref[...], preferred_element_type=jnp.float32)
           + heads_b_ref[...])

    def _address(head, w_prev, mem_rows):
        # field extraction (all VPU/EUP on vreg-resident data)
        k = head[:, :M]                                  # (B, M)
        beta = _softplus(head[:, M:M + 1])               # (B, 1)
        g = jax.nn.sigmoid(head[:, M + 1:M + 2])         # (B, 1)
        s_raw = head[:, M + 2:M + 5]                     # (B, 3)
        gamma = 1.0 + _softplus(head[:, M + 5:M + 6])    # (B, 1)

        # shift softmax (3 taps)
        s_raw = s_raw - jnp.max(s_raw, axis=-1, keepdims=True)
        s_exp = jnp.exp(s_raw)
        s = s_exp * pl.reciprocal(jnp.sum(s_exp, axis=-1, keepdims=True),
                                  approx=True)

        # content addressing: cosine similarity -> sharpened softmax.
        # One rsqrt on the squared-norm product replaces sqrt+sqrt+recip.
        dot = jnp.sum(mem_rows * k[:, None, :], axis=-1)             # (B, N)
        mem_sq = jnp.sum(mem_rows * mem_rows, axis=-1)               # (B, N)
        k_sq = jnp.sum(k * k, axis=-1, keepdims=True)                # (B, 1)
        sim = dot * lax.rsqrt(mem_sq * k_sq + 1e-32)
        sc = beta * sim
        sc = sc - jnp.max(sc, axis=-1, keepdims=True)
        ex = jnp.exp(sc)
        wc = ex * pl.reciprocal(jnp.sum(ex, axis=-1, keepdims=True),
                                approx=True)

        # interpolation with previous weights
        wg = g * wc + (1.0 - g) * w_prev

        # circular 3-tap shift:  w~[i] = wg[i-1]*s0 + wg[i]*s1 + wg[i+1]*s2
        wg_m1 = jnp.concatenate([wg[:, -1:], wg[:, :-1]], axis=1)
        wg_p1 = jnp.concatenate([wg[:, 1:], wg[:, :1]], axis=1)
        wt = wg_m1 * s[:, 0:1] + wg * s[:, 1:2] + wg_p1 * s[:, 2:3]

        # sharpening: w^gamma / sum(w^gamma)
        wpow = jnp.exp(gamma * jnp.log(jnp.maximum(wt, 1e-16)))
        return wpow * pl.reciprocal(
            jnp.sum(wpow, axis=-1, keepdims=True) + 1e-16, approx=True)

    reads, w_news = [], []
    col = 0

    # read heads (address + read against pre-write memory)
    for r in range(NUM_READ_HEADS):
        head = raw[:, col:col + READ_COLS]
        col += READ_COLS
        w = _address(head, wprev_ref[:, r * N:(r + 1) * N], mem)
        reads.append(jnp.sum(mem * w[:, :, None], axis=1))           # (B, M)
        w_news.append(w)

    # write heads (erase then add)
    for j in range(NUM_WRITE_HEADS):
        head = raw[:, col:col + WRITE_COLS]
        col += WRITE_COLS
        idx = NUM_READ_HEADS + j
        w = _address(head, wprev_ref[:, idx * N:(idx + 1) * N], mem)
        e = jax.nn.sigmoid(head[:, M + 6:2 * M + 6])                 # (B, M)
        a = head[:, 2 * M + 6:3 * M + 6]                             # (B, M)
        wcol = w[:, :, None]                                         # (B, N, 1)
        mem = mem * (1.0 - wcol * e[:, None, :]) + wcol * a[:, None, :]
        w_news.append(w)

    mem_out_ref[...] = mem

    reads_cat = reads[0] if len(reads) == 1 else jnp.concatenate(reads, axis=1)
    reads_out_ref[...] = reads_cat
    w_out_ref[...] = (w_news[0] if len(w_news) == 1
                      else jnp.concatenate(w_news, axis=1))

    # ---- output FC + sigmoid on [h, reads] ----------------------------------
    fc_in = jnp.concatenate([h, reads_cat], axis=1)
    z = (jnp.dot(fc_in, fc_w_ref[...], preferred_element_type=jnp.float32)
         + fc_b_ref[...])
    o_ref[...] = jax.nn.sigmoid(z)


def _ntm_step(x, reads, h, c, w_prev, memory,
              lstm_w, lstm_b, heads_w, heads_b, fc_w, fc_b):
    B = x.shape[0]
    out_shape = (
        jax.ShapeDtypeStruct((B, NUM_OUTPUTS), jnp.float32),             # o
        jax.ShapeDtypeStruct((B, NUM_READ_HEADS * MEM_M), jnp.float32),  # reads
        jax.ShapeDtypeStruct((B, CONTROLLER_SIZE), jnp.float32),         # h
        jax.ShapeDtypeStruct((B, CONTROLLER_SIZE), jnp.float32),         # c
        jax.ShapeDtypeStruct((B, NUM_HEADS * MEM_N), jnp.float32),       # w
        jax.ShapeDtypeStruct((B, MEM_N, MEM_M), jnp.float32),            # memory
    )
    # No grid: the whole working set (< 100 KB) lives in VMEM for the single
    # kernel invocation.  Memory (input 5) is aliased to its output (output 5)
    # so the updated memory is written back in place.
    return pl.pallas_call(
        _ntm_step_kernel,
        out_shape=out_shape,
        input_output_aliases={5: 5},
    )(x, reads, h, c, w_prev, memory,
      lstm_w, lstm_b, heads_w, heads_b, fc_w, fc_b)


# ---- parameters / state ------------------------------------------------------
def init_params(key):
    ks = jax.random.split(key, 6)

    def dense(k, din, dout):
        kw, kb = jax.random.split(k)
        return (0.05 * jax.random.normal(kw, (din, dout), jnp.float32),
                0.05 * jax.random.normal(kb, (1, dout), jnp.float32))

    p = {}
    # stacked LSTM weight: [W_ih ; W_hh]  ->  (CTRL_IN + H, 4H)
    p["lstm_w"] = 0.05 * jax.random.normal(
        ks[0], (CTRL_IN + CONTROLLER_SIZE, 4 * CONTROLLER_SIZE), jnp.float32)
    p["lstm_b"] = jnp.zeros((1, 4 * CONTROLLER_SIZE), jnp.float32)
    p["h0"] = 0.05 * jax.random.normal(ks[1], (1, CONTROLLER_SIZE), jnp.float32)
    p["c0"] = 0.05 * jax.random.normal(ks[2], (1, CONTROLLER_SIZE), jnp.float32)
    # stacked read+write head projections -> (H, HEADS_COLS)
    p["heads_w"], p["heads_b"] = dense(ks[3], CONTROLLER_SIZE, HEADS_COLS)
    # initial read vectors for all read heads, stacked
    p["r0"] = 0.01 * jax.random.normal(
        ks[4], (1, NUM_READ_HEADS * MEM_M), jnp.float32)
    # output FC
    p["fc_w"], p["fc_b"] = dense(
        ks[5], CONTROLLER_SIZE + NUM_READ_HEADS * MEM_M, NUM_OUTPUTS)
    p["mem_bias"] = jnp.full((1, MEM_N, MEM_M), 1e-6, jnp.float32)
    return p


def init_sequence(params, batch):
    """Equivalent of Model.init_sequence(): build previous_state and memory."""
    reads = jnp.tile(params["r0"], (batch, 1))
    h = jnp.tile(params["h0"], (batch, 1))
    c = jnp.tile(params["c0"], (batch, 1))
    w_prev = jnp.zeros((batch, NUM_HEADS * MEM_N), jnp.float32)
    memory = jnp.tile(params["mem_bias"], (batch, 1, 1))
    return (reads, (h, c), w_prev), memory


@jax.jit
def ntm_forward(params, x, state, memory):
    """Model.forward: returns (o, previous_state, memory)."""
    reads_prev, (h_prev, c_prev), w_prev = state
    o, reads, h, c, w_new, mem_new = _ntm_step(
        x, reads_prev, h_prev, c_prev, w_prev, memory,
        params["lstm_w"], params["lstm_b"],
        params["heads_w"], params["heads_b"],
        params["fc_w"], params["fc_b"])
    return o, (reads, (h, c), w_new), mem_new


if __name__ == "__main__":
    key = jax.random.PRNGKey(0)
    pkey, xkey = jax.random.split(key)
    params = init_params(pkey)
    state, memory = init_sequence(params, BATCH)
    x = jax.random.normal(xkey, (BATCH, NUM_INPUTS), jnp.float32)

    o, new_state, new_memory = ntm_forward(params, x, state, memory)
    jax.block_until_ready((o, new_state, new_memory))

    assert o.shape == (BATCH, NUM_OUTPUTS)
    assert new_memory.shape == (BATCH, MEM_N, MEM_M)
    assert new_state[1][0].shape == (BATCH, CONTROLLER_SIZE)
    assert not bool(jnp.any(jnp.isnan(o)))
    assert not bool(jnp.any(jnp.isnan(new_memory)))
    print("KERNEL_OK")
</pallas_src>

<mosaic_0001>
module attributes {stable_mosaic.version = 11 : i64} {
  func.func @_ntm_step_kernel(%arg0: memref<2x8xf32, #tpu.memory_space<vmem>>, %arg1: memref<2x8xf32, #tpu.memory_space<vmem>>, %arg2: memref<2x32xf32, #tpu.memory_space<vmem>>, %arg3: memref<2x32xf32, #tpu.memory_space<vmem>>, %arg4: memref<2x32xf32, #tpu.memory_space<vmem>>, %arg5: memref<2x16x8xf32, #tpu.memory_space<vmem>>, %arg6: memref<48x128xf32, #tpu.memory_space<vmem>>, %arg7: memref<1x128xf32, #tpu.memory_space<vmem>>, %arg8: memref<32x44xf32, #tpu.memory_space<vmem>>, %arg9: memref<1x44xf32, #tpu.memory_space<vmem>>, %arg10: memref<40x8xf32, #tpu.memory_space<vmem>>, %arg11: memref<1x8xf32, #tpu.memory_space<vmem>>, %arg12: memref<2x8xf32, #tpu.memory_space<vmem>>, %arg13: memref<2x8xf32, #tpu.memory_space<vmem>>, %arg14: memref<2x32xf32, #tpu.memory_space<vmem>>, %arg15: memref<2x32xf32, #tpu.memory_space<vmem>>, %arg16: memref<2x32xf32, #tpu.memory_space<vmem>>, %arg17: memref<2x16x8xf32, #tpu.memory_space<vmem>>) attributes {dimension_semantics = [], scalar_prefetch = 0 : i64, scratch_operands = 0 : i64, tpu.core_type = #tpu.core_type<tc>} {
    %c0 = arith.constant 0 : index
    %c0_0 = arith.constant 0 : index
    %c0_1 = arith.constant 0 : index
    %0 = vector.load %arg5[%c0, %c0_0, %c0_1] : memref<2x16x8xf32, #tpu.memory_space<vmem>>, vector<2x16x8xf32>
    %c0_2 = arith.constant 0 : index
    %c0_3 = arith.constant 0 : index
    %1 = vector.load %arg2[%c0_2, %c0_3] : memref<2x32xf32, #tpu.memory_space<vmem>>, vector<2x32xf32>
    %c0_4 = arith.constant 0 : index
    %c0_5 = arith.constant 0 : index
    %2 = vector.load %arg3[%c0_4, %c0_5] : memref<2x32xf32, #tpu.memory_space<vmem>>, vector<2x32xf32>
    %c0_6 = arith.constant 0 : index
    %c0_7 = arith.constant 0 : index
    %3 = vector.load %arg0[%c0_6, %c0_7] : memref<2x8xf32, #tpu.memory_space<vmem>>, vector<2x8xf32>
    %c0_8 = arith.constant 0 : index
    %c0_9 = arith.constant 0 : index
    %4 = vector.load %arg1[%c0_8, %c0_9] : memref<2x8xf32, #tpu.memory_space<vmem>>, vector<2x8xf32>
    %5 = tpu.concatenate %3, %4, %1 in 1 : vector<2x8xf32>, vector<2x8xf32>, vector<2x32xf32> -> vector<2x48xf32>
    %c0_10 = arith.constant 0 : index
    %c0_11 = arith.constant 0 : index
    %6 = vector.load %arg6[%c0_10, %c0_11] : memref<48x128xf32, #tpu.memory_space<vmem>>, vector<48x128xf32>
    %cst = arith.constant dense<0.000000e+00> : vector<2x128xf32>
    %7 = tpu.matmul %5, %6, %cst {dimension_numbers = #tpu.dot_dimension_numbers<[1], [0], [0], [1], [0, 0, 1, 1], [], []>} : vector<2x48xf32>, vector<48x128xf32>, vector<2x128xf32> -> vector<2x128xf32>
    %c0_12 = arith.constant 0 : index
    %c0_13 = arith.constant 0 : index
    %8 = vector.load %arg7[%c0_12, %c0_13] : memref<1x128xf32, #tpu.memory_space<vmem>>, vector<1x128xf32>
    %9 = vector.broadcast %8 : vector<1x128xf32> to vector<2x128xf32>
    %10 = arith.addf %7, %9 : vector<2x128xf32>
    %11 = vector.extract_strided_slice %10 {offsets = [0, 0], sizes = [2, 32], strides = [1, 1]} : vector<2x128xf32> to vector<2x32xf32>
    %12 = arith.negf %11 : vector<2x32xf32>
    %13 = math.exp %12 : vector<2x32xf32>
    %cst_14 = arith.constant 1.000000e+00 : f32
    %14 = vector.broadcast %cst_14 : f32 to vector<2x32xf32>
    %15 = arith.addf %14, %13 : vector<2x32xf32>
    %16 = arith.divf %14, %15 : vector<2x32xf32>
    %17 = vector.extract_strided_slice %10 {offsets = [0, 32], sizes = [2, 32], strides = [1, 1]} : vector<2x128xf32> to vector<2x32xf32>
    %18 = arith.negf %17 : vector<2x32xf32>
    %19 = math.exp %18 : vector<2x32xf32>
    %cst_15 = arith.constant 1.000000e+00 : f32
    %20 = vector.broadcast %cst_15 : f32 to vector<2x32xf32>
    %21 = arith.addf %20, %19 : vector<2x32xf32>
    %22 = arith.divf %20, %21 : vector<2x32xf32>
    %23 = vector.extract_strided_slice %10 {offsets = [0, 64], sizes = [2, 32], strides = [1, 1]} : vector<2x128xf32> to vector<2x32xf32>
    %24 = math.tanh %23 : vector<2x32xf32>
    %25 = vector.extract_strided_slice %10 {offsets = [0, 96], sizes = [2, 32], strides = [1, 1]} : vector<2x128xf32> to vector<2x32xf32>
    %26 = arith.negf %25 : vector<2x32xf32>
    %27 = math.exp %26 : vector<2x32xf32>
    %cst_16 = arith.constant 1.000000e+00 : f32
    %28 = vector.broadcast %cst_16 : f32 to vector<2x32xf32>
    %29 = arith.addf %28, %27 : vector<2x32xf32>
    %30 = arith.divf %28, %29 : vector<2x32xf32>
    %31 = arith.mulf %22, %2 : vector<2x32xf32>
    %32 = arith.mulf %16, %24 : vector<2x32xf32>
    %33 = arith.addf %31, %32 : vector<2x32xf32>
    %34 = math.tanh %33 : vector<2x32xf32>
    %35 = arith.mulf %30, %34 : vector<2x32xf32>
    %c0_17 = arith.constant 0 : index
    %c0_18 = arith.constant 0 : index
    %36 = vector.load %arg14[%c0_17, %c0_18] : memref<2x32xf32, #tpu.memory_space<vmem>>, vector<2x32xf32>
    tpu.vector_store %arg14[%c0_17, %c0_18], %35 {strides = array<i32>} : memref<2x32xf32, #tpu.memory_space<vmem>>, vector<2x32xf32>,
    %c0_19 = arith.constant 0 : index
    %c0_20 = arith.constant 0 : index
    %37 = vector.load %arg15[%c0_19, %c0_20] : memref<2x32xf32, #tpu.memory_space<vmem>>, vector<2x32xf32>
    tpu.vector_store %arg15[%c0_19, %c0_20], %33 {strides = array<i32>} : memref<2x32xf32, #tpu.memory_space<vmem>>, vector<2x32xf32>,
    %c0_21 = arith.constant 0 : index
    %c0_22 = arith.constant 0 : index
    %38 = vector.load %arg8[%c0_21, %c0_22] : memref<32x44xf32, #tpu.memory_space<vmem>>, vector<32x44xf32>
    %cst_23 = arith.constant dense<0.000000e+00> : vector<2x44xf32>
    %39 = tpu.matmul %35, %38, %cst_23 {dimension_numbers = #tpu.dot_dimension_numbers<[1], [0], [0], [1], [0, 0, 1, 1], [], []>} : vector<2x32xf32>, vector<32x44xf32>, vector<2x44xf32> -> vector<2x44xf32>
    %c0_24 = arith.constant 0 : index
    %c0_25 = arith.constant 0 : index
    %40 = vector.load %arg9[%c0_24, %c0_25] : memref<1x44xf32, #tpu.memory_space<vmem>>, vector<1x44xf32>
    %41 = vector.broadcast %40 : vector<1x44xf32> to vector<2x44xf32>
    %42 = arith.addf %39, %41 : vector<2x44xf32>
    %43 = vector.extract_strided_slice %42 {offsets = [0, 0], sizes = [2, 14], strides = [1, 1]} : vector<2x44xf32> to vector<2x14xf32>
    %c0_26 = arith.constant 0 : index
    %c0_27 = arith.constant 0 : index
    %44 = vector.load %arg4[%c0_26, %c0_27] : memref<2x32xf32, #tpu.memory_space<vmem>>, vector<2x16xf32>
    %45 = vector.extract_strided_slice %43 {offsets = [0, 0], sizes = [2, 8], strides = [1, 1]} : vector<2x14xf32> to vector<2x8xf32>
    %46 = vector.extract_strided_slice %43 {offsets = [0, 8], sizes = [2, 1], strides = [1, 1]} : vector<2x14xf32> to vector<2x1xf32>
    %cst_28 = arith.constant 0.000000e+00 : f32
    %47 = vector.broadcast %cst_28 : f32 to vector<2x1xf32>
    %48 = arith.maximumf %46, %47 : vector<2x1xf32>
    %49 = math.absf %46 : vector<2x1xf32>
    %cst_29 = arith.constant 0.000000e+00 : f32
    %50 = vector.broadcast %cst_29 : f32 to vector<2x1xf32>
    %51 = arith.subf %50, %49 : vector<2x1xf32>
    %52 = math.exp %51 : vector<2x1xf32>
    %cst_30 = arith.constant 1.000000e+00 : f32
    %53 = vector.broadcast %cst_30 : f32 to vector<2x1xf32>
    %54 = arith.addf %53, %52 : vector<2x1xf32>
    %55 = math.log %54 : vector<2x1xf32>
    %56 = arith.addf %48, %55 : vector<2x1xf32>
    %57 = vector.extract_strided_slice %43 {offsets = [0, 9], sizes = [2, 1], strides = [1, 1]} : vector<2x14xf32> to vector<2x1xf32>
    %58 = arith.negf %57 : vector<2x1xf32>
    %59 = math.exp %58 : vector<2x1xf32>
    %cst_31 = arith.constant 1.000000e+00 : f32
    %60 = vector.broadcast %cst_31 : f32 to vector<2x1xf32>
    %61 = arith.addf %60, %59 : vector<2x1xf32>
    %62 = arith.divf %60, %61 : vector<2x1xf32>
    %63 = vector.extract_strided_slice %43 {offsets = [0, 10], sizes = [2, 3], strides = [1, 1]} : vector<2x14xf32> to vector<2x3xf32>
    %64 = vector.extract_strided_slice %43 {offsets = [0, 13], sizes = [2, 1], strides = [1, 1]} : vector<2x14xf32> to vector<2x1xf32>
    %cst_32 = arith.constant 0.000000e+00 : f32
    %65 = vector.broadcast %cst_32 : f32 to vector<2x1xf32>
    %66 = arith.maximumf %64, %65 : vector<2x1xf32>
    %67 = math.absf %64 : vector<2x1xf32>
    %cst_33 = arith.constant 0.000000e+00 : f32
    %68 = vector.broadcast %cst_33 : f32 to vector<2x1xf32>
    %69 = arith.subf %68, %67 : vector<2x1xf32>
    %70 = math.exp %69 : vector<2x1xf32>
    %cst_34 = arith.constant 1.000000e+00 : f32
    %71 = vector.broadcast %cst_34 : f32 to vector<2x1xf32>
    %72 = arith.addf %71, %70 : vector<2x1xf32>
    %73 = math.log %72 : vector<2x1xf32>
    %74 = arith.addf %66, %73 : vector<2x1xf32>
    %cst_35 = arith.constant 1.000000e+00 : f32
    %75 = vector.broadcast %cst_35 : f32 to vector<2x1xf32>
    %76 = arith.addf %75, %74 : vector<2x1xf32>
    %cst_36 = arith.constant dense<0xFF800000> : vector<2xf32>
    %77 = vector.multi_reduction <maximumf>, %63, %cst_36 [1] : vector<2x3xf32> to vector<2xf32>
    %78 = vector.shape_cast %77 : vector<2xf32> to vector<2x1xf32>
    %79 = vector.broadcast %78 : vector<2x1xf32> to vector<2x3xf32>
    %80 = arith.subf %63, %79 : vector<2x3xf32>
    %81 = math.exp %80 : vector<2x3xf32>
    %cst_37 = arith.constant dense<0.000000e+00> : vector<2xf32>
    %82 = vector.multi_reduction <add>, %81, %cst_37 [1] : vector<2x3xf32> to vector<2xf32>
    %83 = vector.shape_cast %82 : vector<2xf32> to vector<2x1xf32>
    %84 = tpu.reciprocal %83 {approx = true} : vector<2x1xf32> -> vector<2x1xf32>
    %85 = vector.broadcast %84 : vector<2x1xf32> to vector<2x3xf32>
    %86 = arith.mulf %81, %85 : vector<2x3xf32>
    %87 = vector.shape_cast %45 : vector<2x8xf32> to vector<2x1x8xf32>
    %88 = vector.broadcast %87 : vector<2x1x8xf32> to vector<2x16x8xf32>
    %89 = arith.mulf %0, %88 : vector<2x16x8xf32>
    %cst_38 = arith.constant dense<0.000000e+00> : vector<2x16xf32>
    %90 = vector.multi_reduction <add>, %89, %cst_38 [2] : vector<2x16x8xf32> to vector<2x16xf32>
    %91 = arith.mulf %0, %0 : vector<2x16x8xf32>
    %cst_39 = arith.constant dense<0.000000e+00> : vector<2x16xf32>
    %92 = vector.multi_reduction <add>, %91, %cst_39 [2] : vector<2x16x8xf32> to vector<2x16xf32>
    %93 = arith.mulf %45, %45 : vector<2x8xf32>
    %cst_40 = arith.constant dense<0.000000e+00> : vector<2xf32>
    %94 = vector.multi_reduction <add>, %93, %cst_40 [1] : vector<2x8xf32> to vector<2xf32>
    %95 = vector.shape_cast %94 : vector<2xf32> to vector<2x1xf32>
    %96 = vector.broadcast %95 : vector<2x1xf32> to vector<2x16xf32>
    %97 = arith.mulf %92, %96 : vector<2x16xf32>
    %cst_41 = arith.constant 1.000000e-32 : f32
    %98 = vector.broadcast %cst_41 : f32 to vector<2x16xf32>
    %99 = arith.addf %97, %98 : vector<2x16xf32>
    %100 = math.rsqrt %99 : vector<2x16xf32>
    %101 = arith.mulf %90, %100 : vector<2x16xf32>
    %102 = vector.broadcast %56 : vector<2x1xf32> to vector<2x16xf32>
    %103 = arith.mulf %102, %101 : vector<2x16xf32>
    %cst_42 = arith.constant dense<0xFF800000> : vector<2xf32>
    %104 = vector.multi_reduction <maximumf>, %103, %cst_42 [1] : vector<2x16xf32> to vector<2xf32>
    %105 = vector.shape_cast %104 : vector<2xf32> to vector<2x1xf32>
    %106 = vector.broadcast %105 : vector<2x1xf32> to vector<2x16xf32>
    %107 = arith.subf %103, %106 : vector<2x16xf32>
    %108 = math.exp %107 : vector<2x16xf32>
    %cst_43 = arith.constant dense<0.000000e+00> : vector<2xf32>
    %109 = vector.multi_reduction <add>, %108, %cst_43 [1] : vector<2x16xf32> to vector<2xf32>
    %110 = vector.shape_cast %109 : vector<2xf32> to vector<2x1xf32>
    %111 = tpu.reciprocal %110 {approx = true} : vector<2x1xf32> -> vector<2x1xf32>
    %112 = vector.broadcast %111 : vector<2x1xf32> to vector<2x16xf32>
    %113 = arith.mulf %108, %112 : vector<2x16xf32>
    %114 = vector.broadcast %62 : vector<2x1xf32> to vector<2x16xf32>
    %115 = arith.mulf %114, %113 : vector<2x16xf32>
    %cst_44 = arith.constant 1.000000e+00 : f32
    %116 = vector.broadcast %cst_44 : f32 to vector<2x1xf32>
    %117 = arith.subf %116, %62 : vector<2x1xf32>
    %118 = vector.broadcast %117 : vector<2x1xf32> to vector<2x16xf32>
    %119 = arith.mulf %118, %44 : vector<2x16xf32>
    %120 = arith.addf %115, %119 : vector<2x16xf32>
    %121 = vector.extract_strided_slice %120 {offsets = [0, 15], sizes = [2, 1], strides = [1, 1]} : vector<2x16xf32> to vector<2x1xf32>
    %122 = vector.extract_strided_slice %120 {offsets = [0, 0], sizes = [2, 15], strides = [1, 1]} : vector<2x16xf32> to vector<2x15xf32>
    %123 = tpu.concatenate %121, %122 in 1 : vector<2x1xf32>, vector<2x15xf32> -> vector<2x16xf32>
    %124 = vector.extract_strided_slice %120 {offsets = [0, 1], sizes = [2, 15], strides = [1, 1]} : vector<2x16xf32> to vector<2x15xf32>
    %125 = vector.extract_strided_slice %120 {offsets = [0, 0], sizes = [2, 1], strides = [1, 1]} : vector<2x16xf32> to vector<2x1xf32>
    %126 = tpu.concatenate %124, %125 in 1 : vector<2x15xf32>, vector<2x1xf32> -> vector<2x16xf32>
    %127 = vector.extract_strided_slice %86 {offsets = [0, 0], sizes = [2, 1], strides = [1, 1]} : vector<2x3xf32> to vector<2x1xf32>
    %128 = vector.broadcast %127 : vector<2x1xf32> to vector<2x16xf32>
    %129 = arith.mulf %123, %128 : vector<2x16xf32>
    %130 = vector.extract_strided_slice %86 {offsets = [0, 1], sizes = [2, 1], strides = [1, 1]} : vector<2x3xf32> to vector<2x1xf32>
    %131 = vector.broadcast %130 : vector<2x1xf32> to vector<2x16xf32>
    %132 = arith.mulf %120, %131 : vector<2x16xf32>
    %133 = arith.addf %129, %132 : vector<2x16xf32>
    %134 = vector.extract_strided_slice %86 {offsets = [0, 2], sizes = [2, 1], strides = [1, 1]} : vector<2x3xf32> to vector<2x1xf32>
    %135 = vector.broadcast %134 : vector<2x1xf32> to vector<2x16xf32>
    %136 = arith.mulf %126, %135 : vector<2x16xf32>
    %137 = arith.addf %133, %136 : vector<2x16xf32>
    %cst_45 = arith.constant 1.000000e-16 : f32
    %138 = vector.broadcast %cst_45 : f32 to vector<2x16xf32>
    %139 = arith.maximumf %137, %138 : vector<2x16xf32>
    %140 = math.log %139 : vector<2x16xf32>
    %141 = vector.broadcast %76 : vector<2x1xf32> to vector<2x16xf32>
    %142 = arith.mulf %141, %140 : vector<2x16xf32>
    %143 = math.exp %142 : vector<2x16xf32>
    %cst_46 = arith.constant dense<0.000000e+00> : vector<2xf32>
    %144 = vector.multi_reduction <add>, %143, %cst_46 [1] : vector<2x16xf32> to vector<2xf32>
    %145 = vector.shape_cast %144 : vector<2xf32> to vector<2x1xf32>
    %cst_47 = arith.constant 1.000000e-16 : f32
    %146 = vector.broadcast %cst_47 : f32 to vector<2x1xf32>
    %147 = arith.addf %145, %146 : vector<2x1xf32>
    %148 = tpu.reciprocal %147 {approx = true} : vector<2x1xf32> -> vector<2x1xf32>
    %149 = vector.broadcast %148 : vector<2x1xf32> to vector<2x16xf32>
    %150 = arith.mulf %143, %149 : vector<2x16xf32>
    %151 = vector.shape_cast %150 : vector<2x16xf32> to vector<2x16x1xf32>
    %152 = vector.broadcast %151 : vector<2x16x1xf32> to vector<2x16x8xf32>
    %153 = arith.mulf %0, %152 : vector<2x16x8xf32>
    %cst_48 = arith.constant dense<0.000000e+00> : vector<2x8xf32>
    %154 = vector.multi_reduction <add>, %153, %cst_48 [1] : vector<2x16x8xf32> to vector<2x8xf32>
    %155 = vector.extract_strided_slice %42 {offsets = [0, 14], sizes = [2, 30], strides = [1, 1]} : vector<2x44xf32> to vector<2x30xf32>
    %c0_49 = arith.constant 0 : index
    %c16 = arith.constant 16 : index
    %156 = vector.load %arg4[%c0_49, %c16] : memref<2x32xf32, #tpu.memory_space<vmem>>, vector<2x16xf32>
    %157 = vector.extract_strided_slice %155 {offsets = [0, 0], sizes = [2, 8], strides = [1, 1]} : vector<2x30xf32> to vector<2x8xf32>
    %158 = vector.extract_strided_slice %155 {offsets = [0, 8], sizes = [2, 1], strides = [1, 1]} : vector<2x30xf32> to vector<2x1xf32>
    %cst_50 = arith.constant 0.000000e+00 : f32
    %159 = vector.broadcast %cst_50 : f32 to vector<2x1xf32>
    %160 = arith.maximumf %158, %159 : vector<2x1xf32>
    %161 = math.absf %158 : vector<2x1xf32>
    %cst_51 = arith.constant 0.000000e+00 : f32
    %162 = vector.broadcast %cst_51 : f32 to vector<2x1xf32>
    %163 = arith.subf %162, %161 : vector<2x1xf32>
    %164 = math.exp %163 : vector<2x1xf32>
    %cst_52 = arith.constant 1.000000e+00 : f32
    %165 = vector.broadcast %cst_52 : f32 to vector<2x1xf32>
    %166 = arith.addf %165, %164 : vector<2x1xf32>
    %167 = math.log %166 : vector<2x1xf32>
    %168 = arith.addf %160, %167 : vector<2x1xf32>
    %169 = vector.extract_strided_slice %155 {offsets = [0, 9], sizes = [2, 1], strides = [1, 1]} : vector<2x30xf32> to vector<2x1xf32>
    %170 = arith.negf %169 : vector<2x1xf32>
    %171 = math.exp %170 : vector<2x1xf32>
    %cst_53 = arith.constant 1.000000e+00 : f32
    %172 = vector.broadcast %cst_53 : f32 to vector<2x1xf32>
    %173 = arith.addf %172, %171 : vector<2x1xf32>
    %174 = arith.divf %172, %173 : vector<2x1xf32>
    %175 = vector.extract_strided_slice %155 {offsets = [0, 10], sizes = [2, 3], strides = [1, 1]} : vector<2x30xf32> to vector<2x3xf32>
    %176 = vector.extract_strided_slice %155 {offsets = [0, 13], sizes = [2, 1], strides = [1, 1]} : vector<2x30xf32> to vector<2x1xf32>
    %cst_54 = arith.constant 0.000000e+00 : f32
    %177 = vector.broadcast %cst_54 : f32 to vector<2x1xf32>
    %178 = arith.maximumf %176, %177 : vector<2x1xf32>
    %179 = math.absf %176 : vector<2x1xf32>
    %cst_55 = arith.constant 0.000000e+00 : f32
    %180 = vector.broadcast %cst_55 : f32 to vector<2x1xf32>
    %181 = arith.subf %180, %179 : vector<2x1xf32>
    %182 = math.exp %181 : vector<2x1xf32>
    %cst_56 = arith.constant 1.000000e+00 : f32
    %183 = vector.broadcast %cst_56 : f32 to vector<2x1xf32>
    %184 = arith.addf %183, %182 : vector<2x1xf32>
    %185 = math.log %184 : vector<2x1xf32>
    %186 = arith.addf %178, %185 : vector<2x1xf32>
    %cst_57 = arith.constant 1.000000e+00 : f32
    %187 = vector.broadcast %cst_57 : f32 to vector<2x1xf32>
    %188 = arith.addf %187, %186 : vector<2x1xf32>
    %cst_58 = arith.constant dense<0xFF800000> : vector<2xf32>
    %189 = vector.multi_reduction <maximumf>, %175, %cst_58 [1] : vector<2x3xf32> to vector<2xf32>
    %190 = vector.shape_cast %189 : vector<2xf32> to vector<2x1xf32>
    %191 = vector.broadcast %190 : vector<2x1xf32> to vector<2x3xf32>
    %192 = arith.subf %175, %191 : vector<2x3xf32>
    %193 = math.exp %192 : vector<2x3xf32>
    %cst_59 = arith.constant dense<0.000000e+00> : vector<2xf32>
    %194 = vector.multi_reduction <add>, %193, %cst_59 [1] : vector<2x3xf32> to vector<2xf32>
    %195 = vector.shape_cast %194 : vector<2xf32> to vector<2x1xf32>
    %196 = tpu.reciprocal %195 {approx = true} : vector<2x1xf32> -> vector<2x1xf32>
    %197 = vector.broadcast %196 : vector<2x1xf32> to vector<2x3xf32>
    %198 = arith.mulf %193, %197 : vector<2x3xf32>
    %199 = vector.shape_cast %157 : vector<2x8xf32> to vector<2x1x8xf32>
    %200 = vector.broadcast %199 : vector<2x1x8xf32> to vector<2x16x8xf32>
    %201 = arith.mulf %0, %200 : vector<2x16x8xf32>
    %cst_60 = arith.constant dense<0.000000e+00> : vector<2x16xf32>
    %202 = vector.multi_reduction <add>, %201, %cst_60 [2] : vector<2x16x8xf32> to vector<2x16xf32>
    %203 = arith.mulf %0, %0 : vector<2x16x8xf32>
    %cst_61 = arith.constant dense<0.000000e+00> : vector<2x16xf32>
    %204 = vector.multi_reduction <add>, %203, %cst_61 [2] : vector<2x16x8xf32> to vector<2x16xf32>
    %205 = arith.mulf %157, %157 : vector<2x8xf32>
    %cst_62 = arith.constant dense<0.000000e+00> : vector<2xf32>
    %206 = vector.multi_reduction <add>, %205, %cst_62 [1] : vector<2x8xf32> to vector<2xf32>
    %207 = vector.shape_cast %206 : vector<2xf32> to vector<2x1xf32>
    %208 = vector.broadcast %207 : vector<2x1xf32> to vector<2x16xf32>
    %209 = arith.mulf %204, %208 : vector<2x16xf32>
    %cst_63 = arith.constant 1.000000e-32 : f32
    %210 = vector.broadcast %cst_63 : f32 to vector<2x16xf32>
    %211 = arith.addf %209, %210 : vector<2x16xf32>
    %212 = math.rsqrt %211 : vector<2x16xf32>
    %213 = arith.mulf %202, %212 : vector<2x16xf32>
    %214 = vector.broadcast %168 : vector<2x1xf32> to vector<2x16xf32>
    %215 = arith.mulf %214, %213 : vector<2x16xf32>
    %cst_64 = arith.constant dense<0xFF800000> : vector<2xf32>
    %216 = vector.multi_reduction <maximumf>, %215, %cst_64 [1] : vector<2x16xf32> to vector<2xf32>
    %217 = vector.shape_cast %216 : vector<2xf32> to vector<2x1xf32>
    %218 = vector.broadcast %217 : vector<2x1xf32> to vector<2x16xf32>
    %219 = arith.subf %215, %218 : vector<2x16xf32>
    %220 = math.exp %219 : vector<2x16xf32>
    %cst_65 = arith.constant dense<0.000000e+00> : vector<2xf32>
    %221 = vector.multi_reduction <add>, %220, %cst_65 [1] : vector<2x16xf32> to vector<2xf32>
    %222 = vector.shape_cast %221 : vector<2xf32> to vector<2x1xf32>
    %223 = tpu.reciprocal %222 {approx = true} : vector<2x1xf32> -> vector<2x1xf32>
    %224 = vector.broadcast %223 : vector<2x1xf32> to vector<2x16xf32>
    %225 = arith.mulf %220, %224 : vector<2x16xf32>
    %226 = vector.broadcast %174 : vector<2x1xf32> to vector<2x16xf32>
    %227 = arith.mulf %226, %225 : vector<2x16xf32>
    %cst_66 = arith.constant 1.000000e+00 : f32
    %228 = vector.broadcast %cst_66 : f32 to vector<2x1xf32>
    %229 = arith.subf %228, %174 : vector<2x1xf32>
    %230 = vector.broadcast %229 : vector<2x1xf32> to vector<2x16xf32>
    %231 = arith.mulf %230, %156 : vector<2x16xf32>
    %232 = arith.addf %227, %231 : vector<2x16xf32>
    %233 = vector.extract_strided_slice %232 {offsets = [0, 15], sizes = [2, 1], strides = [1, 1]} : vector<2x16xf32> to vector<2x1xf32>
    %234 = vector.extract_strided_slice %232 {offsets = [0, 0], sizes = [2, 15], strides = [1, 1]} : vector<2x16xf32> to vector<2x15xf32>
    %235 = tpu.concatenate %233, %234 in 1 : vector<2x1xf32>, vector<2x15xf32> -> vector<2x16xf32>
    %236 = vector.extract_strided_slice %232 {offsets = [0, 1], sizes = [2, 15], strides = [1, 1]} : vector<2x16xf32> to vector<2x15xf32>
    %237 = vector.extract_strided_slice %232 {offsets = [0, 0], sizes = [2, 1], strides = [1, 1]} : vector<2x16xf32> to vector<2x1xf32>
    %238 = tpu.concatenate %236, %237 in 1 : vector<2x15xf32>, vector<2x1xf32> -> vector<2x16xf32>
    %239 = vector.extract_strided_slice %198 {offsets = [0, 0], sizes = [2, 1], strides = [1, 1]} : vector<2x3xf32> to vector<2x1xf32>
    %240 = vector.broadcast %239 : vector<2x1xf32> to vector<2x16xf32>
    %241 = arith.mulf %235, %240 : vector<2x16xf32>
    %242 = vector.extract_strided_slice %198 {offsets = [0, 1], sizes = [2, 1], strides = [1, 1]} : vector<2x3xf32> to vector<2x1xf32>
    %243 = vector.broadcast %242 : vector<2x1xf32> to vector<2x16xf32>
    %244 = arith.mulf %232, %243 : vector<2x16xf32>
    %245 = arith.addf %241, %244 : vector<2x16xf32>
    %246 = vector.extract_strided_slice %198 {offsets = [0, 2], sizes = [2, 1], strides = [1, 1]} : vector<2x3xf32> to vector<2x1xf32>
    %247 = vector.broadcast %246 : vector<2x1xf32> to vector<2x16xf32>
    %248 = arith.mulf %238, %247 : vector<2x16xf32>
    %249 = arith.addf %245, %248 : vector<2x16xf32>
    %cst_67 = arith.constant 1.000000e-16 : f32
    %250 = vector.broadcast %cst_67 : f32 to vector<2x16xf32>
    %251 = arith.maximumf %249, %250 : vector<2x16xf32>
    %252 = math.log %251 : vector<2x16xf32>
    %253 = vector.broadcast %188 : vector<2x1xf32> to vector<2x16xf32>
    %254 = arith.mulf %253, %252 : vector<2x16xf32>
    %255 = math.exp %254 : vector<2x16xf32>
    %cst_68 = arith.constant dense<0.000000e+00> : vector<2xf32>
    %256 = vector.multi_reduction <add>, %255, %cst_68 [1] : vector<2x16xf32> to vector<2xf32>
    %257 = vector.shape_cast %256 : vector<2xf32> to vector<2x1xf32>
    %cst_69 = arith.constant 1.000000e-16 : f32
    %258 = vector.broadcast %cst_69 : f32 to vector<2x1xf32>
    %259 = arith.addf %257, %258 : vector<2x1xf32>
    %260 = tpu.reciprocal %259 {approx = true} : vector<2x1xf32> -> vector<2x1xf32>
    %261 = vector.broadcast %260 : vector<2x1xf32> to vector<2x16xf32>
    %262 = arith.mulf %255, %261 : vector<2x16xf32>
    %263 = vector.extract_strided_slice %155 {offsets = [0, 14], sizes = [2, 8], strides = [1, 1]} : vector<2x30xf32> to vector<2x8xf32>
    %264 = arith.negf %263 : vector<2x8xf32>
    %265 = math.exp %264 : vector<2x8xf32>
    %cst_70 = arith.constant 1.000000e+00 : f32
    %266 = vector.broadcast %cst_70 : f32 to vector<2x8xf32>
    %267 = arith.addf %266, %265 : vector<2x8xf32>
    %268 = arith.divf %266, %267 : vector<2x8xf32>
    %269 = vector.extract_strided_slice %155 {offsets = [0, 22], sizes = [2, 8], strides = [1, 1]} : vector<2x30xf32> to vector<2x8xf32>
    %270 = vector.shape_cast %262 : vector<2x16xf32> to vector<2x16x1xf32>
    %271 = vector.shape_cast %268 : vector<2x8xf32> to vector<2x1x8xf32>
    %272 = vector.broadcast %270 : vector<2x16x1xf32> to vector<2x16x8xf32>
    %273 = vector.broadcast %271 : vector<2x1x8xf32> to vector<2x16x8xf32>
    %274 = arith.mulf %272, %273 : vector<2x16x8xf32>
    %cst_71 = arith.constant 1.000000e+00 : f32
    %275 = vector.broadcast %cst_71 : f32 to vector<2x16x8xf32>
    %276 = arith.subf %275, %274 : vector<2x16x8xf32>
    %277 = arith.mulf %0, %276 : vector<2x16x8xf32>
    %278 = vector.shape_cast %269 : vector<2x8xf32> to vector<2x1x8xf32>
    %279 = vector.broadcast %270 : vector<2x16x1xf32> to vector<2x16x8xf32>
    %280 = vector.broadcast %278 : vector<2x1x8xf32> to vector<2x16x8xf32>
    %281 = arith.mulf %279, %280 : vector<2x16x8xf32>
    %282 = arith.addf %277, %281 : vector<2x16x8xf32>
    %c0_72 = arith.constant 0 : index
    %c0_73 = arith.constant 0 : index
    %c0_74 = arith.constant 0 : index
    %283 = vector.load %arg17[%c0_72, %c0_73, %c0_74] : memref<2x16x8xf32, #tpu.memory_space<vmem>>, vector<2x16x8xf32>
    tpu.vector_store %arg17[%c0_72, %c0_73, %c0_74], %282 {strides = array<i32>} : memref<2x16x8xf32, #tpu.memory_space<vmem>>, vector<2x16x8xf32>,
    %c0_75 = arith.constant 0 : index
    %c0_76 = arith.constant 0 : index
    %284 = vector.load %arg13[%c0_75, %c0_76] : memref<2x8xf32, #tpu.memory_space<vmem>>, vector<2x8xf32>
    tpu.vector_store %arg13[%c0_75, %c0_76], %154 {strides = array<i32>} : memref<2x8xf32, #tpu.memory_space<vmem>>, vector<2x8xf32>,
    %285 = tpu.concatenate %150, %262 in 1 : vector<2x16xf32>, vector<2x16xf32> -> vector<2x32xf32>
    %c0_77 = arith.constant 0 : index
    %c0_78 = arith.constant 0 : index
    %286 = vector.load %arg16[%c0_77, %c0_78] : memref<2x32xf32, #tpu.memory_space<vmem>>, vector<2x32xf32>
    tpu.vector_store %arg16[%c0_77, %c0_78], %285 {strides = array<i32>} : memref<2x32xf32, #tpu.memory_space<vmem>>, vector<2x32xf32>,
    %287 = tpu.concatenate %35, %154 in 1 : vector<2x32xf32>, vector<2x8xf32> -> vector<2x40xf32>
    %c0_79 = arith.constant 0 : index
    %c0_80 = arith.constant 0 : index
    %288 = vector.load %arg10[%c0_79, %c0_80] : memref<40x8xf32, #tpu.memory_space<vmem>>, vector<40x8xf32>
    %cst_81 = arith.constant dense<0.000000e+00> : vector<2x8xf32>
    %289 = tpu.matmul %287, %288, %cst_81 {dimension_numbers = #tpu.dot_dimension_numbers<[1], [0], [0], [1], [0, 0, 1, 1], [], []>} : vector<2x40xf32>, vector<40x8xf32>, vector<2x8xf32> -> vector<2x8xf32>
    %c0_82 = arith.constant 0 : index
    %c0_83 = arith.constant 0 : index
    %290 = vector.load %arg11[%c0_82, %c0_83] : memref<1x8xf32, #tpu.memory_space<vmem>>, vector<1x8xf32>
    %291 = vector.broadcast %290 : vector<1x8xf32> to vector<2x8xf32>
    %292 = arith.addf %289, %291 : vector<2x8xf32>
    %293 = arith.negf %292 : vector<2x8xf32>
    %294 = math.exp %293 : vector<2x8xf32>
    %cst_84 = arith.constant 1.000000e+00 : f32
    %295 = vector.broadcast %cst_84 : f32 to vector<2x8xf32>
    %296 = arith.addf %295, %294 : vector<2x8xf32>
    %297 = arith.divf %295, %296 : vector<2x8xf32>
    %c0_85 = arith.constant 0 : index
    %c0_86 = arith.constant 0 : index
    %298 = vector.load %arg12[%c0_85, %c0_86] : memref<2x8xf32, #tpu.memory_space<vmem>>, vector<2x8xf32>
    tpu.vector_store %arg12[%c0_85, %c0_86], %297 {strides = array<i32>} : memref<2x8xf32, #tpu.memory_space<vmem>>, vector<2x8xf32>,
    return
  }
}

</mosaic_0001>

<llo_original>
// kernel: ntm_forward.1
$region0: #{ntm_forward.1}
  #allocation0 [shape = 'u32[]', space=smem, size = 0x4, offset = 0x4, fixed_abs, tag = 'smem constant byte address 0x4 - core index']
  #allocation1 [shape = 'u32[72,128]{1,0:T(1,128)}', space=vmem, size = 0x9000, scoped, tag = 'internal scratch']
  %s0 = inlined_call_operand.vmem [shape: f32[2,8], index: 0, kind: input, shape index: {}]
  %s1 = inlined_call_operand.vmem [shape: f32[2,8], index: 1, kind: input, shape index: {}]
  %s2 = inlined_call_operand.vmem [shape: f32[2,32], index: 2, kind: input, shape index: {}]
  %s3 = inlined_call_operand.vmem [shape: f32[2,32], index: 3, kind: input, shape index: {}]
  %s4 = inlined_call_operand.vmem [shape: f32[2,32], index: 4, kind: input, shape index: {}]
  %s5 = inlined_call_operand.vmem [shape: f32[2,16,8], index: 5, kind: input, shape index: {}, may-alias: {5,17}]
  %s6 = inlined_call_operand.vmem [shape: f32[48,128], index: 6, kind: input, shape index: {}]
  %s7 = inlined_call_operand.vmem [shape: f32[1,128], index: 7, kind: input, shape index: {}]
  %s8 = inlined_call_operand.vmem [shape: f32[32,44], index: 8, kind: input, shape index: {}]
  %s9 = inlined_call_operand.hbm [shape: f32[1,44], index: 9, kind: input, shape index: {}]
  %s10 = inlined_call_operand.vmem [shape: f32[40,8], index: 10, kind: input, shape index: {}]
  %s11 = inlined_call_operand.hbm [shape: f32[1,8], index: 11, kind: input, shape index: {}]
  %s12 = inlined_call_operand.hbm [shape: f32[2,8], index: 12, kind: output, shape index: {0}]
  %s13 = inlined_call_operand.hbm [shape: f32[2,8], index: 13, kind: output, shape index: {1}]
  %s14 = inlined_call_operand.hbm [shape: f32[2,32], index: 14, kind: output, shape index: {2}]
  %s15 = inlined_call_operand.hbm [shape: f32[2,32], index: 15, kind: output, shape index: {3}]
  %s16 = inlined_call_operand.hbm [shape: f32[2,32], index: 16, kind: output, shape index: {4}]
  %s17 = inlined_call_operand.vmem [shape: f32[2,16,8], index: 17, kind: output, shape index: {5}, may-alias: {5,17}]
  %18 = xla_tuple %s12, %s13, %s14, %s15, %s16, %s17
  %s19 = sld [smem:[#allocation0]]
  $region106: #{ntm_forward.1} parent=0
    _
  %s21 = ssub.s32 1, %s19
  %s22 = scalar_select 0, %s21, %s19
  $region1: #{ntm_forward.1} parent=0
    #allocation2 [shape = 'u8[512]{0}', space=vmem, size = 0x400, scoped, tag = 'input window, operand 9, single buffered']
    #allocation3 [shape = 's32[1]{0}', space=sflag, size = 0x4, scoped, tag = 'scoped memory for ntm_forward.1']
    #allocation4 [shape = 's32[1]{0}', space=sflag, size = 0x4, scoped, tag = 'scoped memory for ntm_forward.1']
    #allocation5 [shape = 'u8[512]{0}', space=vmem, size = 0x400, scoped, tag = 'input window, operand 11, single buffered']
    #allocation6 [shape = 's32[1]{0}', space=sflag, size = 0x4, scoped, tag = 'scoped memory for ntm_forward.1']
    #allocation7 [shape = 'u8[1024]{0}', space=vmem, size = 0x400, scoped, tag = 'output window, operand 0, single buffered']
    #allocation8 [shape = 'u8[1024]{0}', space=vmem, size = 0x400, scoped, tag = 'output window, operand 1, single buffered']
    #allocation9 [shape = 's32[1]{0}', space=sflag, size = 0x4, scoped, tag = 'scoped memory for ntm_forward.1']
    #allocation10 [shape = 'u8[1024]{0}', space=vmem, size = 0x400, scoped, tag = 'output window, operand 2, single buffered']
    #allocation11 [shape = 'u8[1024]{0}', space=vmem, size = 0x400, scoped, tag = 'output window, operand 3, single buffered']
    #allocation12 [shape = 's32[1]{0}', space=sflag, size = 0x4, scoped, tag = 'scoped memory for ntm_forward.1']
    #allocation13 [shape = 'u8[1024]{0}', space=vmem, size = 0x400, scoped, tag = 'output window, operand 4, single buffered']
    %23 = vsyncpa [#allocation3], 0
    %24 = vsyncpa [#allocation6], 0
    %25 = vsyncpa [#allocation4], 0
    %26 = vsyncpa [#allocation9], 0
    %27 = vsyncpa [#allocation12], 0
    // Predicated region
    $region2: #{ntm_forward.1} parent=1 // pred_check
      _
    $region3: #{ntm_forward.1} parent=1 // pred_check_branch
      %29 = sbr.rel (0) target = $region5
    $region4: #{ntm_forward.1} parent=1 // pred_region
      _
    $region5: #{ntm_forward.1} parent=1 // pred_fallthru
      _
    // Predicated region
    $region6: #{ntm_forward.1} parent=1 // pred_check
      _
    $region7: #{ntm_forward.1} parent=1 // pred_check_branch
      %31 = sbr.rel (0) target = $region9
    $region8: #{ntm_forward.1} parent=1 // pred_region
      _
    $region9: #{ntm_forward.1} parent=1 // pred_fallthru
      _
    // Predicated region
    $region10: #{ntm_forward.1} parent=1 // pred_check
      _
    $region11: #{ntm_forward.1} parent=1 // pred_check_branch
      %33 = sbr.rel (0) target = $region13
    $region12: #{ntm_forward.1} parent=1 // pred_region
      _
    $region13: #{ntm_forward.1} parent=1 // pred_fallthru
      _
    // Predicated region
    $region14: #{ntm_forward.1} parent=1 // pred_check
      _
    $region15: #{ntm_forward.1} parent=1 // pred_check_branch
      %35 = sbr.rel (0) target = $region17
    $region16: #{ntm_forward.1} parent=1 // pred_region
      _
    $region17: #{ntm_forward.1} parent=1 // pred_fallthru
      _
    // Predicated region
    $region18: #{ntm_forward.1} parent=1 // pred_check
      _
    $region19: #{ntm_forward.1} parent=1 // pred_check_branch
      %37 = sbr.rel (0) target = $region21
    $region20: #{ntm_forward.1} parent=1 // pred_region
      _
    $region21: #{ntm_forward.1} parent=1 // pred_fallthru
      _
    // Predicated region
    $region22: #{ntm_forward.1} parent=1 // pred_check
      _
    $region23: #{ntm_forward.1} parent=1 // pred_check_branch
      %39 = sbr.rel (0) target = $region25
    $region24: #{ntm_forward.1} parent=1 // pred_region
      _
    $region25: #{ntm_forward.1} parent=1 // pred_fallthru
      _
    // Predicated region
    $region26: #{ntm_forward.1} parent=1 // pred_check
      _
    $region27: #{ntm_forward.1} parent=1 // pred_check_branch
      %41 = sbr.rel (0) target = $region29
    $region28: #{ntm_forward.1} parent=1 // pred_region
      _
    $region29: #{ntm_forward.1} parent=1 // pred_fallthru
      _
    // Predicated region
    $region30: #{ntm_forward.1} parent=1 // pred_check
      _
    $region31: #{ntm_forward.1} parent=1 // pred_check_branch
      %43 = sbr.rel (0) target = $region33
    $region32: #{ntm_forward.1} parent=1 // pred_region
      _
    $region33: #{ntm_forward.1} parent=1 // pred_fallthru
      _
    // Predicated region
    $region34: #{ntm_forward.1} parent=1 // pred_check
      _
    $region35: #{ntm_forward.1} parent=1 // pred_check_branch
      %45 = sbr.rel (0) target = $region37
    $region36: #{ntm_forward.1} parent=1 // pred_region
      _
    $region37: #{ntm_forward.1} parent=1 // pred_fallthru
      _
    // Predicated region
    $region38: #{ntm_forward.1} parent=1 // pred_check
      _
    $region39: #{ntm_forward.1} parent=1 // pred_check_branch
      %47 = sbr.rel (0) target = $region41
    $region40: #{ntm_forward.1} parent=1 // pred_region
      %49 = vsyncadd [#allocation3], 0
      %s51 = sshll.u32 %s9, 4
      %s52 = int_to_ptr.hbm [resolvable:$true] %s51
      %s53 = sshll.u32 [#allocation2], 4
      %s54 = int_to_ptr.vmem [resolvable:$true] %s53
      %56 = dma.hbm_to_vmem [thread:$0]  %s52, 16, %s54, [#allocation3]
    $region41: #{ntm_forward.1} parent=1 // pred_fallthru
      _
    // Predicated region
    $region42: #{ntm_forward.1} parent=1 // pred_check
      _
    $region43: #{ntm_forward.1} parent=1 // pred_check_branch
      %58 = sbr.rel (0) target = $region45
    $region44: #{ntm_forward.1} parent=1 // pred_region
      _
    $region45: #{ntm_forward.1} parent=1 // pred_fallthru
      _
    // Predicated region
    $region46: #{ntm_forward.1} parent=1 // pred_check
      _
    $region47: #{ntm_forward.1} parent=1 // pred_check_branch
      %60 = sbr.rel (0) target = $region49
    $region48: #{ntm_forward.1} parent=1 // pred_region
      %62 = vsyncadd [#allocation6], 0
      %s64 = sshll.u32 %s11, 4
      %s65 = int_to_ptr.hbm [resolvable:$true] %s64
      %s66 = sshll.u32 [#allocation5], 4
      %s67 = int_to_ptr.vmem [resolvable:$true] %s66
      %69 = dma.hbm_to_vmem [thread:$0]  %s65, 16, %s67, [#allocation6]
    $region49: #{ntm_forward.1} parent=1 // pred_fallthru
      _
    // Predicated region
    $region50: #{ntm_forward.1} parent=1 // pred_check
      _
    $region51: #{ntm_forward.1} parent=1 // pred_check_branch
      %71 = sbr.rel (0) target = $region53
    $region52: #{ntm_forward.1} parent=1 // pred_region
      %73 = dma.done [#allocation3], 16
    $region53: #{ntm_forward.1} parent=1 // pred_fallthru
      _
    // Predicated region
    $region54: #{ntm_forward.1} parent=1 // pred_check
      _
    $region55: #{ntm_forward.1} parent=1 // pred_check_branch
      %75 = sbr.rel (0) target = $region57
    $region56: #{ntm_forward.1} parent=1 // pred_region
      %77 = dma.done [#allocation6], 16
    $region57: #{ntm_forward.1} parent=1 // pred_fallthru
      _
    %v78 = vld [vmem:[%s5] sm:$0xff]
    %v79 = vld [vmem:[%s5 + $0x8] sm:$0xff]
    %v80 = vld [vmem:[%s5 + $0x10] sm:$0xff]
    %v81 = vld [vmem:[%s5 + $0x18] sm:$0xff]
    %v82 = vld [vmem:[%s2] sm:$0x3]
    %v83 = vld [vmem:[%s3] sm:$0x3]
    %v84 = vld [vmem:[%s0] sm:$0x3]
    %v85 = vld [vmem:[%s1] sm:$0x3]
    %87 = vrot.lane.b32.xlu0 %v85, 8
    %v88 = vpop.permute.xlu0 %87
    %91 = vrot.lane.b32.xlu0 %v82, 16
    %v92 = vpop.permute.xlu0 %91
    %vm94 = vcmask 64512
    %v95 = vsel %vm94, %v84, %v88
    %vm96 = vcmask 130048
    %v97 = vsel %vm96, %v95, %v92
    %v98 = vld [vmem:[%s6] sm:$0xff]
    %v99 = vld [vmem:[%s6 + $0x8] sm:$0xff]
    %v100 = vld [vmem:[%s6 + $0x10] sm:$0xff]
    %v101 = vld [vmem:[%s6 + $0x18] sm:$0xff]
    %v102 = vld [vmem:[%s6 + $0x20] sm:$0xff]
    %v103 = vld [vmem:[%s6 + $0x28] sm:$0xff]
    %v104 = vld [vmem:[%s7] sm:$0x1]
    %v106 = vperm.slane %v104, 0
    %vm108 = vcmask 392192
    %v110 = vsel %vm108, %v97, 0
    %112 = vmatpush.msra.mxu0 0.0
    %113 = vmatpush.msra.mxu0 0.0
    %114 = vmatpush.msra.mxu0 0.0
    %115 = vmatpush.msra.mxu0 0.0
    %116 = vmatpush.msra.mxu0 0.0
    %117 = vmatpush.msra.mxu0 0.0
    %118 = vmatpush.msra.mxu0 0.0
    %119 = vmatpush.msra.mxu0 0.0
    %120 = vmatpush.msra.mxu0 0.0
    %121 = vmatpush.msra.mxu0 0.0
    %122 = vmatpush.msra.mxu0 %v103
    %123 = vmatpush.msra.mxu0 %v102
    %124 = vmatpush.msra.mxu0 %v101
    %125 = vmatpush.msra.mxu0 %v100
    %126 = vmatpush.msra.mxu0 %v99
    %127 = vmatpush.msra.mxu0 %v98
    %128 = vmatmul.f32.gmra.mxu0 %v110
    %v129 = vpop.f32.mrf.mxu0
    %v130 = vadd.f32 %v106, %v129
    %131 = vdwg.mxu0
    %v132 = vxor.u32 %v130, 2147483648
    %v133 = vmul.f32 %v132, 1.442695
    %v134 = vpow.pop %v133
    %v135 = vadd.f32 %v134, 1.0
    %v136 = vrcp.pop %v135
    %v137 = vmul.f32 %v135, %v136
    %v138 = vsub.f32 1.0, %v137
    %v139 = vmul.f32 %v136, %v138
    %v140 = vadd.f32 %v136, %v139
    %vm141 = vweird.f32 %v135
    %vm142 = vweird.f32 %v136
    %vm143 = vmor %vm141, %vm142
    %v144 = vsel %vm143, %v136, %v140
    %v145 = vand.u32 2147483647, %v135
    %vm146 = vcmp.eq.f32.partialorder %v145, 8.507059e+37
    %v147 = vand.u32 %v135, 2147483648
    %v148 = vor.u32 1.1754944e-38, %v147
    %v149 = vsel %vm146, %v148, %v144
    %v150 = vmul.f32 1.0, %v149
    %v151 = vtanh.pop %v130
    %153 = vrot.lane.b32.xlu0 %v83, 32
    %v154 = vpop.permute.xlu0 %153
    %v156 = vmul.f32 %v150, %v154
    %158 = vrot.lane.b32.xlu0 %v151, 64
    %v159 = vpop.permute.xlu0 %158
    %v161 = vmul.f32 %v150, %v159
    %163 = vrot.lane.b32.xlu0 %v161, 32
    %v164 = vpop.permute.xlu0 %163
    %v166 = vadd.f32 %v156, %v164
    %v167 = vtanh.pop %v166
    %169 = vrot.lane.b32.xlu0 %v167, 64
    %v170 = vpop.permute.xlu0 %169
    %v172 = vmul.f32 %v150, %v170
    %174 = vrot.lane.b32.xlu0 %v172, 32
    %v175 = vpop.permute.xlu0 %174
    %vm177 = vcmask 254976
    %178 = vst.msk [vmem:[#allocation10] sm:$0x3] %vm177, %v175
    %180 = vrot.lane.b32.xlu0 %v166, 96
    %v181 = vpop.permute.xlu0 %180
    %183 = vst.msk [vmem:[#allocation11] sm:$0x3] %vm177, %v181
    %v184 = vld [vmem:[%s8] sm:$0xff]
    %v185 = vld [vmem:[%s8 + $0x8] sm:$0xff]
    %v186 = vld [vmem:[%s8 + $0x10] sm:$0xff]
    %v187 = vld [vmem:[%s8 + $0x18] sm:$0xff]
    %v188 = vld [vmem:[#allocation2] sm:$0x1]
    %v190 = vperm.slane %v188, 0
    %vm192 = vcmask 261120
    %v193 = vsel %vm192, %v175, 0
    %195 = vmatpush.msra.mxu0 0.0
    %196 = vmatpush.msra.mxu0 0.0
    %197 = vmatpush.msra.mxu0 0.0
    %198 = vmatpush.msra.mxu0 0.0
    %199 = vmatpush.msra.mxu0 0.0
    %200 = vmatpush.msra.mxu0 0.0
    %201 = vmatpush.msra.mxu0 0.0
    %202 = vmatpush.msra.mxu0 0.0
    %203 = vmatpush.msra.mxu0 0.0
    %204 = vmatpush.msra.mxu0 0.0
    %205 = vmatpush.msra.mxu0 0.0
    %206 = vmatpush.msra.mxu0 0.0
    %207 = vmatpush.msra.mxu0 %v187
    %208 = vmatpush.msra.mxu0 %v186
    %209 = vmatpush.msra.mxu0 %v185
    %210 = vmatpush.msra.mxu0 %v184
    %211 = vmatmul.f32.gmra.mxu0 %v193
    %v212 = vpop.f32.mrf.mxu0
    %v213 = vadd.f32 %v190, %v212
    %214 = vdwg.mxu0
    %v215 = vld [vmem:[%s4] sm:$0x3]
    %v216 = vmax.f32 %v213, 0.0
    %v217 = vand.u32 2147483647, %v213
    %v218 = vsub.f32 0.0, %v217
    %v219 = vmul.f32 %v218, 1.442695
    %v220 = vpow.pop %v219
    %v221 = vadd.f32 %v220, 1.0
    %v222 = vlog2.pop %v221
    %v223 = vmul.f32 %v222, 0.6931472
    %v224 = vadd.f32 %v216, %v223
    %v225 = vxor.u32 %v213, 2147483648
    %v226 = vmul.f32 %v225, 1.442695
    %v227 = vpow.pop %v226
    %v228 = vadd.f32 %v227, 1.0
    %v229 = vrcp.pop %v228
    %v230 = vmul.f32 %v228, %v229
    %v231 = vsub.f32 1.0, %v230
    %v232 = vmul.f32 %v229, %v231
    %v233 = vadd.f32 %v229, %v232
    %vm234 = vweird.f32 %v228
    %vm235 = vweird.f32 %v229
    %vm236 = vmor %vm234, %vm235
    %v237 = vsel %vm236, %v229, %v233
    %v238 = vand.u32 2147483647, %v228
    %vm239 = vcmp.eq.f32.partialorder %v238, 8.507059e+37
    %v240 = vand.u32 %v228, 2147483648
    %v241 = vor.u32 1.1754944e-38, %v240
    %v242 = vsel %vm239, %v241, %v237
    %v243 = vmul.f32 1.0, %v242
    %v244 = vadd.f32 %v224, 1.0
    %vm245 = vcmask 99408
    %v246 = vsel %vm245, %v213, -inf
    %247 = vmax.xlane.f32.xlu0 %v246
    %v248 = vpop.xlane.xlu0 %247
    %v249 = vsub.f32 %v213, %v248
    %v250 = vmul.f32 %v249, 1.442695
    %v251 = vpow.pop %v250
    %253 = vrot.lane.b32.xlu0 %v251, 118
    %v254 = vpop.permute.xlu0 %253
    %vm256 = vcmask 17408
    %v257 = vsel %vm256, %v254, 0.0
    %258 = vadd.xlane.f32.xlu0 %v257
    %v259 = vpop.xlane.xlu0 %258
    %v260 = vrcp.pop %v259
    %v261 = vmul.f32 %v251, %v260
    %v263 = vrot.slane %v213, 1
    %v264 = vperm.slane %v213, 0
    %v265 = vperm.slane %v263, 0
    %v268 = vmul.f32 %v78, %v264
    %v269 = vmul.f32 %v79, %v264
    %v270 = vmul.f32 %v80, %v265
    %v271 = vmul.f32 %v81, %v265
    %v272 = vsel %vm94, %v268, 0.0
    %273 = vadd.xlane.f32.xlu0 %v272
    %v274 = vpop.xlane.xlu0 %273
    %v275 = vsel %vm94, %v269, 0.0
    %276 = vadd.xlane.f32.xlu0 %v275
    %v277 = vpop.xlane.xlu0 %276
    %v278 = vsel %vm94, %v270, 0.0
    %279 = vadd.xlane.f32.xlu0 %v278
    %v280 = vpop.xlane.xlu0 %279
    %v281 = vsel %vm94, %v271, 0.0
    %282 = vadd.xlane.f32.xlu0 %v281
    %v283 = vpop.xlane.xlu0 %282
    %v284 = vmul.f32 %v78, %v78
    %v285 = vmul.f32 %v79, %v79
    %v286 = vmul.f32 %v80, %v80
    %v287 = vmul.f32 %v81, %v81
    %v288 = vsel %vm94, %v284, 0.0
    %289 = vadd.xlane.f32.xlu0 %v288
    %v290 = vpop.xlane.xlu0 %289
    %v291 = vsel %vm94, %v285, 0.0
    %292 = vadd.xlane.f32.xlu0 %v291
    %v293 = vpop.xlane.xlu0 %292
    %v294 = vsel %vm94, %v286, 0.0
    %295 = vadd.xlane.f32.xlu0 %v294
    %v296 = vpop.xlane.xlu0 %295
    %v297 = vsel %vm94, %v287, 0.0
    %298 = vadd.xlane.f32.xlu0 %v297
    %v299 = vpop.xlane.xlu0 %298
    %v300 = vmul.f32 %v213, %v213
    %vm301 = vcmask 58368
    %v302 = vsel %vm301, %v300, 0.0
    %303 = vadd.xlane.f32.xlu0 %v302
    %v304 = vpop.xlane.xlu0 %303
    %v306 = vperm.slane %v304, 0
    %v307 = vperm.slane %v304, 1
    %v310 = vmul.f32 %v290, %v306
    %v311 = vmul.f32 %v293, %v306
    %v312 = vmul.f32 %v296, %v307
    %v313 = vmul.f32 %v299, %v307
    %v314 = vadd.f32 %v310, 1e-32
    %v315 = vadd.f32 %v311, 1e-32
    %v316 = vadd.f32 %v312, 1e-32
    %v317 = vadd.f32 %v313, 1e-32
    %v318 = vrsqrt.pop %v314
    %v319 = vmul.f32 %v318, %v314
    %v320 = vmul.f32 %v319, %v318
    %v321 = vmul.f32 0.5, %v320
    %v322 = vsub.f32 1.5, %v321
    %v323 = vmul.f32 %v318, %v322
    %vm324 = vweird.f32 %v314
    %vm325 = vweird.f32 %v318
    %vm326 = vmor %vm324, %vm325
    %v327 = vsel %vm326, %v318, %v323
    %v328 = vrsqrt.pop %v315
    %v329 = vmul.f32 %v328, %v315
    %v330 = vmul.f32 %v329, %v328
    %v331 = vmul.f32 0.5, %v330
    %v332 = vsub.f32 1.5, %v331
    %v333 = vmul.f32 %v328, %v332
    %vm334 = vweird.f32 %v315
    %vm335 = vweird.f32 %v328
    %vm336 = vmor %vm334, %vm335
    %v337 = vsel %vm336, %v328, %v333
    %v338 = vrsqrt.pop %v316
    %v339 = vmul.f32 %v338, %v316
    %v340 = vmul.f32 %v339, %v338
    %v341 = vmul.f32 0.5, %v340
    %v342 = vsub.f32 1.5, %v341
    %v343 = vmul.f32 %v338, %v342
    %vm344 = vweird.f32 %v316
    %vm345 = vweird.f32 %v338
    %vm346 = vmor %vm344, %vm345
    %v347 = vsel %vm346, %v338, %v343
    %v348 = vrsqrt.pop %v317
    %v349 = vmul.f32 %v348, %v317
    %v350 = vmul.f32 %v349, %v348
    %v351 = vmul.f32 0.5, %v350
    %v352 = vsub.f32 1.5, %v351
    %v353 = vmul.f32 %v348, %v352
    %vm354 = vweird.f32 %v317
    %vm355 = vweird.f32 %v348
    %vm356 = vmor %vm354, %vm355
    %v357 = vsel %vm356, %v348, %v353
    %v358 = vmul.f32 %v274, %v327
    %v359 = vmul.f32 %v277, %v337
    %v360 = vmul.f32 %v280, %v347
    %v361 = vmul.f32 %v283, %v357
    %363 = vset.pattern.permute.xlu0 8
    %364 = vperm.xlu0 %363, %v224
    %v365 = vpop.permute.xlu0 %364
    %371 = vset.pattern.permute.xlu0 0
    %372 = vperm.xlu0 %371, %v358
    %v373 = vpop.permute.xlu0 %372
    %374 = vset.pattern.permute.xlu0 0
    %375 = vperm.xlu0 %374, %v359
    %v376 = vpop.permute.xlu0 %375
    %377 = vset.pattern.permute.xlu0 0
    %378 = vperm.xlu0 %377, %v360
    %v379 = vpop.permute.xlu0 %378
    %380 = vset.pattern.permute.xlu0 0
    %381 = vperm.xlu0 %380, %v361
    %v382 = vpop.permute.xlu0 %381
    %v383 = vlaneseq
    %v384 = vand.u32 %v383, 127
    %v385 = vperm.slane %v373, %v384
    %v386 = vadd.s32 %v384, 4294967288
    %v387 = vperm.slane %v376, %v386
    %vm388 = vcmask 130112
    %v389 = vsel %vm388, %v387, %v385
    %v390 = vperm.slane %v379, %v384
    %v391 = vperm.slane %v382, %v386
    %v392 = vsel %vm388, %v391, %v390
    %vm393 = vcmask 1041409
    %v394 = vsel %vm393, %v392, %v389
    %v396 = vmul.f32 %v365, %v394
    %vm397 = vcmask 123904
    %v398 = vsel %vm397, %v396, -inf
    %399 = vmax.xlane.f32.xlu0 %v398
    %v400 = vpop.xlane.xlu0 %399
    %v401 = vsub.f32 %v396, %v400
    %v402 = vmul.f32 %v401, 1.442695
    %v403 = vpow.pop %v402
    %v404 = vsel %vm397, %v403, 0.0
    %405 = vadd.xlane.f32.xlu0 %v404
    %v406 = vpop.xlane.xlu0 %405
    %v407 = vrcp.pop %v406
    %v408 = vmul.f32 %v403, %v407
    %410 = vset.pattern.permute.xlu0 9
    %411 = vperm.xlu0 %410, %v243
    %v412 = vpop.permute.xlu0 %411
    %v414 = vmul.f32 %v412, %v408
    %v415 = vsub.f32 1.0, %v243
    %417 = vset.pattern.permute.xlu0 9
    %418 = vperm.xlu0 %417, %v415
    %v419 = vpop.permute.xlu0 %418
    %v421 = vmul.f32 %v419, %v215
    %v422 = vadd.f32 %v414, %v421
    %424 = vrot.lane.b32.xlu0 %v422, 113
    %v425 = vpop.permute.xlu0 %424
    %427 = vrot.lane.b32.xlu0 %v422, 1
    %v428 = vpop.permute.xlu0 %427
    %vm430 = vcmask 7168
    %v431 = vsel %vm430, %v425, %v428
    %432 = vrot.lane.b32.xlu0 %v422, 127
    %v433 = vpop.permute.xlu0 %432
    %435 = vrot.lane.b32.xlu0 %v422, 15
    %v436 = vpop.permute.xlu0 %435
    %vm438 = vcmask 121856
    %v439 = vsel %vm438, %v433, %v436
    %441 = vset.pattern.permute.xlu0 10
    %442 = vperm.xlu0 %441, %v261
    %v443 = vpop.permute.xlu0 %442
    %v445 = vmul.f32 %v431, %v443
    %446 = vset.pattern.permute.xlu0 11
    %447 = vperm.xlu0 %446, %v261
    %v448 = vpop.permute.xlu0 %447
    %v450 = vmul.f32 %v422, %v448
    %v451 = vadd.f32 %v445, %v450
    %452 = vset.pattern.permute.xlu0 12
    %453 = vperm.xlu0 %452, %v261
    %v454 = vpop.permute.xlu0 %453
    %v456 = vmul.f32 %v439, %v454
    %v457 = vadd.f32 %v451, %v456
    %v458 = vmax.f32 %v457, 1e-16
    %v459 = vlog2.pop %v458
    %v460 = vmul.f32 %v459, 0.6931472
    %462 = vset.pattern.permute.xlu0 13
    %463 = vperm.xlu0 %462, %v244
    %v464 = vpop.permute.xlu0 %463
    %v466 = vmul.f32 %v464, %v460
    %v467 = vmul.f32 %v466, 1.442695
    %v468 = vpow.pop %v467
    %v469 = vsel %vm397, %v468, 0.0
    %470 = vadd.xlane.f32.xlu0 %v469
    %v471 = vpop.xlane.xlu0 %470
    %v472 = vadd.f32 %v471, 1e-16
    %v473 = vrcp.pop %v472
    %v474 = vmul.f32 %v468, %v473
    %v475 = vperm.slane %v474, 0
    %v476 = vlaneseq
    %v477 = vshrl.u32 %v476, 7
    %479 = vset.pattern.permute.xlu0 %v477
    %480 = vperm.xlu0 %479, %v475
    %v481 = vpop.permute.xlu0 %480
    %v482 = vlaneseq
    %v483 = vshrl.u32 %v482, 7
    %v484 = vadd.s32 %v483, 8
    %485 = vset.pattern.permute.xlu0 %v484
    %486 = vperm.xlu0 %485, %v475
    %v487 = vpop.permute.xlu0 %486
    %v488 = vperm.slane %v474, 1
    %v489 = vlaneseq
    %v490 = vshrl.u32 %v489, 7
    %492 = vset.pattern.permute.xlu0 %v490
    %493 = vperm.xlu0 %492, %v488
    %v494 = vpop.permute.xlu0 %493
    %v495 = vlaneseq
    %v496 = vshrl.u32 %v495, 7
    %v497 = vadd.s32 %v496, 8
    %498 = vset.pattern.permute.xlu0 %v497
    %499 = vperm.xlu0 %498, %v488
    %v500 = vpop.permute.xlu0 %499
    %v501 = vmul.f32 %v78, %v481
    %v502 = vmul.f32 %v79, %v487
    %v503 = vmul.f32 %v80, %v494
    %v504 = vmul.f32 %v81, %v500
    %v505 = vsel %vm94, %v501, 0.0
    %v506 = vsel %vm94, %v502, 0.0
    %v507 = vadd.f32 %v505, %v506
    %v508 = vrot.slane %v507, 4
    %v509 = vadd.f32 %v507, %v508
    %v510 = vrot.slane %v509, 2
    %v511 = vadd.f32 %v509, %v510
    %v512 = vrot.slane %v511, 1
    %v513 = vadd.f32 %v511, %v512
    %v514 = vsel %vm94, %v503, 0.0
    %v515 = vsel %vm94, %v504, 0.0
    %v516 = vadd.f32 %v514, %v515
    %v517 = vrot.slane %v516, 4
    %v518 = vadd.f32 %v516, %v517
    %v519 = vrot.slane %v518, 2
    %v520 = vadd.f32 %v518, %v519
    %v521 = vrot.slane %v520, 1
    %v522 = vadd.f32 %v520, %v521
    %vm523 = vcmask 214208
    %v524 = vsel %vm523, %v213, -inf
    %525 = vmax.xlane.f32.xlu0 %v524
    %v526 = vpop.xlane.xlu0 %525
    %v527 = vsub.f32 %v213, %v526
    %v528 = vmul.f32 %v527, 1.442695
    %v529 = vpow.pop %v528
    %531 = vrot.lane.b32.xlu0 %v529, 104
    %v532 = vpop.permute.xlu0 %531
    %v534 = vsel %vm256, %v532, 0.0
    %535 = vadd.xlane.f32.xlu0 %v534
    %v536 = vpop.xlane.xlu0 %535
    %v537 = vrcp.pop %v536
    %v538 = vmul.f32 %v529, %v537
    %539 = vrot.lane.b32.xlu0 %v264, 114
    %v540 = vpop.permute.xlu0 %539
    %541 = vrot.lane.b32.xlu0 %v265, 114
    %v542 = vpop.permute.xlu0 %541
    %v545 = vmul.f32 %v78, %v540
    %v546 = vmul.f32 %v79, %v540
    %v547 = vmul.f32 %v80, %v542
    %v548 = vmul.f32 %v81, %v542
    %v549 = vsel %vm94, %v545, 0.0
    %550 = vadd.xlane.f32.xlu0 %v549
    %v551 = vpop.xlane.xlu0 %550
    %v552 = vsel %vm94, %v546, 0.0
    %553 = vadd.xlane.f32.xlu0 %v552
    %v554 = vpop.xlane.xlu0 %553
    %v555 = vsel %vm94, %v547, 0.0
    %556 = vadd.xlane.f32.xlu0 %v555
    %v557 = vpop.xlane.xlu0 %556
    %v558 = vsel %vm94, %v548, 0.0
    %559 = vadd.xlane.f32.xlu0 %v558
    %v560 = vpop.xlane.xlu0 %559
    %562 = vrot.lane.b32.xlu0 %v300, 114
    %v563 = vpop.permute.xlu0 %562
    %v565 = vsel %vm301, %v563, 0.0
    %566 = vadd.xlane.f32.xlu0 %v565
    %v567 = vpop.xlane.xlu0 %566
    %v569 = vperm.slane %v567, 0
    %v570 = vperm.slane %v567, 1
    %v573 = vmul.f32 %v290, %v569
    %v574 = vmul.f32 %v293, %v569
    %v575 = vmul.f32 %v296, %v570
    %v576 = vmul.f32 %v299, %v570
    %v577 = vadd.f32 %v573, 1e-32
    %v578 = vadd.f32 %v574, 1e-32
    %v579 = vadd.f32 %v575, 1e-32
    %v580 = vadd.f32 %v576, 1e-32
    %v581 = vrsqrt.pop %v577
    %v582 = vmul.f32 %v581, %v577
    %v583 = vmul.f32 %v582, %v581
    %v584 = vmul.f32 0.5, %v583
    %v585 = vsub.f32 1.5, %v584
    %v586 = vmul.f32 %v581, %v585
    %vm587 = vweird.f32 %v577
    %vm588 = vweird.f32 %v581
    %vm589 = vmor %vm587, %vm588
    %v590 = vsel %vm589, %v581, %v586
    %v591 = vrsqrt.pop %v578
    %v592 = vmul.f32 %v591, %v578
    %v593 = vmul.f32 %v592, %v591
    %v594 = vmul.f32 0.5, %v593
    %v595 = vsub.f32 1.5, %v594
    %v596 = vmul.f32 %v591, %v595
    %vm597 = vweird.f32 %v578
    %vm598 = vweird.f32 %v591
    %vm599 = vmor %vm597, %vm598
    %v600 = vsel %vm599, %v591, %v596
    %v601 = vrsqrt.pop %v579
    %v602 = vmul.f32 %v601, %v579
    %v603 = vmul.f32 %v602, %v601
    %v604 = vmul.f32 0.5, %v603
    %v605 = vsub.f32 1.5, %v604
    %v606 = vmul.f32 %v601, %v605
    %vm607 = vweird.f32 %v579
    %vm608 = vweird.f32 %v601
    %vm609 = vmor %vm607, %vm608
    %v610 = vsel %vm609, %v601, %v606
    %v611 = vrsqrt.pop %v580
    %v612 = vmul.f32 %v611, %v580
    %v613 = vmul.f32 %v612, %v611
    %v614 = vmul.f32 0.5, %v613
    %v615 = vsub.f32 1.5, %v614
    %v616 = vmul.f32 %v611, %v615
    %vm617 = vweird.f32 %v580
    %vm618 = vweird.f32 %v611
    %vm619 = vmor %vm617, %vm618
    %v620 = vsel %vm619, %v611, %v616
    %v621 = vmul.f32 %v551, %v590
    %v622 = vmul.f32 %v554, %v600
    %v623 = vmul.f32 %v557, %v610
    %v624 = vmul.f32 %v560, %v620
    %625 = vset.pattern.permute.xlu0 22
    %626 = vperm.xlu0 %625, %v224
    %v627 = vpop.permute.xlu0 %626
    %633 = vset.pattern.permute.xlu0 0
    %634 = vperm.xlu0 %633, %v621
    %v635 = vpop.permute.xlu0 %634
    %636 = vset.pattern.permute.xlu0 0
    %637 = vperm.xlu0 %636, %v622
    %v638 = vpop.permute.xlu0 %637
    %639 = vset.pattern.permute.xlu0 0
    %640 = vperm.xlu0 %639, %v623
    %v641 = vpop.permute.xlu0 %640
    %642 = vset.pattern.permute.xlu0 0
    %643 = vperm.xlu0 %642, %v624
    %v644 = vpop.permute.xlu0 %643
    %v645 = vperm.slane %v635, %v384
    %v646 = vperm.slane %v638, %v386
    %v647 = vsel %vm388, %v646, %v645
    %v648 = vperm.slane %v641, %v384
    %v649 = vperm.slane %v644, %v386
    %v650 = vsel %vm388, %v649, %v648
    %v651 = vsel %vm393, %v650, %v647
    %v653 = vmul.f32 %v627, %v651
    %v654 = vsel %vm397, %v653, -inf
    %655 = vmax.xlane.f32.xlu0 %v654
    %v656 = vpop.xlane.xlu0 %655
    %v657 = vsub.f32 %v653, %v656
    %v658 = vmul.f32 %v657, 1.442695
    %v659 = vpow.pop %v658
    %v660 = vsel %vm397, %v659, 0.0
    %661 = vadd.xlane.f32.xlu0 %v660
    %v662 = vpop.xlane.xlu0 %661
    %v663 = vrcp.pop %v662
    %v664 = vmul.f32 %v659, %v663
    %665 = vset.pattern.permute.xlu0 23
    %666 = vperm.xlu0 %665, %v243
    %v667 = vpop.permute.xlu0 %666
    %v669 = vmul.f32 %v667, %v664
    %670 = vset.pattern.permute.xlu0 23
    %671 = vperm.xlu0 %670, %v415
    %v672 = vpop.permute.xlu0 %671
    %v674 = vmul.f32 %v672, %v215
    %676 = vrot.lane.b32.xlu0 %v674, 112
    %v677 = vpop.permute.xlu0 %676
    %v679 = vadd.f32 %v669, %v677
    %681 = vrot.lane.b32.xlu0 %v679, 113
    %v682 = vpop.permute.xlu0 %681
    %684 = vrot.lane.b32.xlu0 %v679, 1
    %v685 = vpop.permute.xlu0 %684
    %v687 = vsel %vm430, %v682, %v685
    %688 = vrot.lane.b32.xlu0 %v679, 127
    %v689 = vpop.permute.xlu0 %688
    %691 = vrot.lane.b32.xlu0 %v679, 15
    %v692 = vpop.permute.xlu0 %691
    %v694 = vsel %vm438, %v689, %v692
    %696 = vset.pattern.permute.xlu0 24
    %697 = vperm.xlu0 %696, %v538
    %v698 = vpop.permute.xlu0 %697
    %v700 = vmul.f32 %v687, %v698
    %701 = vset.pattern.permute.xlu0 25
    %702 = vperm.xlu0 %701, %v538
    %v703 = vpop.permute.xlu0 %702
    %v705 = vmul.f32 %v679, %v703
    %v706 = vadd.f32 %v700, %v705
    %707 = vset.pattern.permute.xlu0 26
    %708 = vperm.xlu0 %707, %v538
    %v709 = vpop.permute.xlu0 %708
    %v711 = vmul.f32 %v694, %v709
    %v712 = vadd.f32 %v706, %v711
    %v713 = vmax.f32 %v712, 1e-16
    %v714 = vlog2.pop %v713
    %v715 = vmul.f32 %v714, 0.6931472
    %716 = vset.pattern.permute.xlu0 27
    %717 = vperm.xlu0 %716, %v244
    %v718 = vpop.permute.xlu0 %717
    %v720 = vmul.f32 %v718, %v715
    %v721 = vmul.f32 %v720, 1.442695
    %v722 = vpow.pop %v721
    %v723 = vsel %vm397, %v722, 0.0
    %724 = vadd.xlane.f32.xlu0 %v723
    %v725 = vpop.xlane.xlu0 %724
    %v726 = vadd.f32 %v725, 1e-16
    %v727 = vrcp.pop %v726
    %v728 = vmul.f32 %v722, %v727
    %v729 = vperm.slane %v728, 0
    %v730 = vlaneseq
    %v731 = vshrl.u32 %v730, 7
    %733 = vset.pattern.permute.xlu0 %v731
    %734 = vperm.xlu0 %733, %v729
    %v735 = vpop.permute.xlu0 %734
    %v736 = vlaneseq
    %v737 = vshrl.u32 %v736, 7
    %v738 = vadd.s32 %v737, 8
    %739 = vset.pattern.permute.xlu0 %v738
    %740 = vperm.xlu0 %739, %v729
    %v741 = vpop.permute.xlu0 %740
    %v742 = vperm.slane %v728, 1
    %v743 = vlaneseq
    %v744 = vshrl.u32 %v743, 7
    %746 = vset.pattern.permute.xlu0 %v744
    %747 = vperm.xlu0 %746, %v742
    %v748 = vpop.permute.xlu0 %747
    %v749 = vlaneseq
    %v750 = vshrl.u32 %v749, 7
    %v751 = vadd.s32 %v750, 8
    %752 = vset.pattern.permute.xlu0 %v751
    %753 = vperm.xlu0 %752, %v742
    %v754 = vpop.permute.xlu0 %753
    %v755 = vrot.slane %v243, 1
    %v756 = vperm.slane %v243, 0
    %v757 = vperm.slane %v755, 0
    %v760 = vmul.f32 %v735, %v756
    %v761 = vmul.f32 %v741, %v756
    %v762 = vmul.f32 %v748, %v757
    %v763 = vmul.f32 %v754, %v757
    %v764 = vsub.f32 1.0, %v760
    %v765 = vsub.f32 1.0, %v761
    %v766 = vsub.f32 1.0, %v762
    %v767 = vsub.f32 1.0, %v763
    %772 = vrot.lane.b32.xlu0 %v764, 100
    %v773 = vpop.permute.xlu0 %772
    %774 = vrot.lane.b32.xlu0 %v765, 100
    %v775 = vpop.permute.xlu0 %774
    %776 = vrot.lane.b32.xlu0 %v766, 100
    %v777 = vpop.permute.xlu0 %776
    %778 = vrot.lane.b32.xlu0 %v767, 100
    %v779 = vpop.permute.xlu0 %778
    %v784 = vmul.f32 %v78, %v773
    %v785 = vmul.f32 %v79, %v775
    %v786 = vmul.f32 %v80, %v777
    %v787 = vmul.f32 %v81, %v779
    %v788 = vmul.f32 %v735, %v264
    %v789 = vmul.f32 %v741, %v264
    %v790 = vmul.f32 %v748, %v265
    %v791 = vmul.f32 %v754, %v265
    %796 = vrot.lane.b32.xlu0 %v788, 92
    %v797 = vpop.permute.xlu0 %796
    %798 = vrot.lane.b32.xlu0 %v789, 92
    %v799 = vpop.permute.xlu0 %798
    %800 = vrot.lane.b32.xlu0 %v790, 92
    %v801 = vpop.permute.xlu0 %800
    %802 = vrot.lane.b32.xlu0 %v791, 92
    %v803 = vpop.permute.xlu0 %802
    %v808 = vadd.f32 %v784, %v797
    %v809 = vadd.f32 %v785, %v799
    %v810 = vadd.f32 %v786, %v801
    %v811 = vadd.f32 %v787, %v803
    %812 = vst.msk [vmem:[%s17] sm:$0xff] %vm94, %v808
    %813 = vst.msk [vmem:[%s17 + $0x8] sm:$0xff] %vm94, %v809
    %814 = vst.msk [vmem:[%s17 + $0x10] sm:$0xff] %vm94, %v810
    %815 = vst.msk [vmem:[%s17 + $0x18] sm:$0xff] %vm94, %v811
    %v818 = vsel %vm393, %v522, %v513
    %820 = vst.msk [vmem:[#allocation8] sm:$0x3] %vm301, %v818
    %822 = vrot.lane.b32.xlu0 %v728, 16
    %v823 = vpop.permute.xlu0 %822
    %v825 = vsel %vm96, %v474, %v823
    %826 = vst.msk [vmem:[#allocation13] sm:$0x3] %vm177, %v825
    %827 = vrot.lane.b32.xlu0 %v818, 32
    %v828 = vpop.permute.xlu0 %827
    %v830 = vsel %vm192, %v175, %v828
    %v831 = vld [vmem:[%s10] sm:$0xff]
    %v832 = vld [vmem:[%s10 + $0x8] sm:$0xff]
    %v833 = vld [vmem:[%s10 + $0x10] sm:$0xff]
    %v834 = vld [vmem:[%s10 + $0x18] sm:$0xff]
    %v835 = vld [vmem:[%s10 + $0x20] sm:$0xff]
    %v836 = vld [vmem:[#allocation5] sm:$0x1]
    %v838 = vperm.slane %v836, 0
    %vm840 = vcmask 326656
    %v842 = vsel %vm840, %v830, 0
    %844 = vmatpush.msra.mxu0 0.0
    %845 = vmatpush.msra.mxu0 0.0
    %846 = vmatpush.msra.mxu0 0.0
    %847 = vmatpush.msra.mxu0 0.0
    %848 = vmatpush.msra.mxu0 0.0
    %849 = vmatpush.msra.mxu0 0.0
    %850 = vmatpush.msra.mxu0 0.0
    %851 = vmatpush.msra.mxu0 0.0
    %852 = vmatpush.msra.mxu0 0.0
    %853 = vmatpush.msra.mxu0 0.0
    %854 = vmatpush.msra.mxu0 0.0
    %855 = vmatpush.msra.mxu0 %v835
    %856 = vmatpush.msra.mxu0 %v834
    %857 = vmatpush.msra.mxu0 %v833
    %858 = vmatpush.msra.mxu0 %v832
    %859 = vmatpush.msra.mxu0 %v831
    %860 = vmatmul.f32.gmra.mxu0 %v842
    %v861 = vpop.f32.mrf.mxu0
    %v862 = vadd.f32 %v838, %v861
    %863 = vdwg.mxu0
    %v864 = vxor.u32 %v862, 2147483648
    %v865 = vmul.f32 %v864, 1.442695
    %v866 = vpow.pop %v865
    %v867 = vadd.f32 %v866, 1.0
    %v868 = vrcp.pop %v867
    %v869 = vmul.f32 %v867, %v868
    %v870 = vsub.f32 1.0, %v869
    %v871 = vmul.f32 %v868, %v870
    %v872 = vadd.f32 %v868, %v871
    %vm873 = vweird.f32 %v867
    %vm874 = vweird.f32 %v868
    %vm875 = vmor %vm873, %vm874
    %v876 = vsel %vm875, %v868, %v872
    %v877 = vand.u32 2147483647, %v867
    %vm878 = vcmp.eq.f32.partialorder %v877, 8.507059e+37
    %v879 = vand.u32 %v867, 2147483648
    %v880 = vor.u32 1.1754944e-38, %v879
    %v881 = vsel %vm878, %v880, %v876
    %v882 = vmul.f32 1.0, %v881
    %883 = vst.msk [vmem:[#allocation7] sm:$0x3] %vm301, %v882
    // Predicated region
    $region58: #{ntm_forward.1} parent=1 // pred_check
      _
    $region59: #{ntm_forward.1} parent=1 // pred_check_branch
      %885 = sbr.rel (0) target = $region61
    $region60: #{ntm_forward.1} parent=1 // pred_region
      %887 = vsyncadd [#allocation4], 0
      %s889 = sshll.u32 [#allocation7], 4
      %s890 = int_to_ptr.vmem [resolvable:$true] %s889
      %s891 = sshll.u32 %s12, 4
      %s892 = int_to_ptr.hbm [resolvable:$true] %s891
      %894 = dma.vmem_to_hbm [thread:$0]  %s890, 32, %s892, [#allocation4]
    $region61: #{ntm_forward.1} parent=1 // pred_fallthru
      _
    // Predicated region
    $region62: #{ntm_forward.1} parent=1 // pred_check
      _
    $region63: #{ntm_forward.1} parent=1 // pred_check_branch
      %896 = sbr.rel (0) target = $region65
    $region64: #{ntm_forward.1} parent=1 // pred_region
      %898 = vsyncadd [#allocation9], 0
      %s900 = sshll.u32 [#allocation8], 4
      %s901 = int_to_ptr.vmem [resolvable:$true] %s900
      %s902 = sshll.u32 %s13, 4
      %s903 = int_to_ptr.hbm [resolvable:$true] %s902
      %905 = dma.vmem_to_hbm [thread:$0]  %s901, 32, %s903, [#allocation9]
    $region65: #{ntm_forward.1} parent=1 // pred_fallthru
      _
    // Predicated region
    $region66: #{ntm_forward.1} parent=1 // pred_check
      _
    $region67: #{ntm_forward.1} parent=1 // pred_check_branch
      %907 = sbr.rel (0) target = $region69
    $region68: #{ntm_forward.1} parent=1 // pred_region
      %909 = vsyncadd [#allocation9], 0
      %s911 = sshll.u32 [#allocation10], 4
      %s912 = int_to_ptr.vmem [resolvable:$true] %s911
      %s913 = sshll.u32 %s14, 4
      %s914 = int_to_ptr.hbm [resolvable:$true] %s913
      %916 = dma.vmem_to_hbm [thread:$0]  %s912, 32, %s914, [#allocation9]
    $region69: #{ntm_forward.1} parent=1 // pred_fallthru
      _
    // Predicated region
    $region70: #{ntm_forward.1} parent=1 // pred_check
      _
    $region71: #{ntm_forward.1} parent=1 // pred_check_branch
      %918 = sbr.rel (0) target = $region73
    $region72: #{ntm_forward.1} parent=1 // pred_region
      %920 = vsyncadd [#allocation12], 0
      %s922 = sshll.u32 [#allocation11], 4
      %s923 = int_to_ptr.vmem [resolvable:$true] %s922
      %s924 = sshll.u32 %s15, 4
      %s925 = int_to_ptr.hbm [resolvable:$true] %s924
      %927 = dma.vmem_to_hbm [thread:$0]  %s923, 32, %s925, [#allocation12]
    $region73: #{ntm_forward.1} parent=1 // pred_fallthru
      _
    // Predicated region
    $region74: #{ntm_forward.1} parent=1 // pred_check
      _
    $region75: #{ntm_forward.1} parent=1 // pred_check_branch
      %929 = sbr.rel (0) target = $region77
    $region76: #{ntm_forward.1} parent=1 // pred_region
      %931 = vsyncadd [#allocation12], 0
      %s933 = sshll.u32 [#allocation13], 4
      %s934 = int_to_ptr.vmem [resolvable:$true] %s933
      %s935 = sshll.u32 %s16, 4
      %s936 = int_to_ptr.hbm [resolvable:$true] %s935
      %938 = dma.vmem_to_hbm [thread:$0]  %s934, 32, %s936, [#allocation12]
    $region77: #{ntm_forward.1} parent=1 // pred_fallthru
      _
    // Predicated region
    $region78: #{ntm_forward.1} parent=1 // pred_check
      _
    $region79: #{ntm_forward.1} parent=1 // pred_check_branch
      %940 = sbr.rel (0) target = $region81
    $region80: #{ntm_forward.1} parent=1 // pred_region
      _
    $region81: #{ntm_forward.1} parent=1 // pred_fallthru
      _
    // Predicated region
    $region82: #{ntm_forward.1} parent=1 // pred_check
      _
    $region83: #{ntm_forward.1} parent=1 // pred_check_branch
      %942 = sbr.rel (0) target = $region85
    $region84: #{ntm_forward.1} parent=1 // pred_region
      %944 = dma.done [#allocation4], 32
    $region85: #{ntm_forward.1} parent=1 // pred_fallthru
      _
    // Predicated region
    $region86: #{ntm_forward.1} parent=1 // pred_check
      _
    $region87: #{ntm_forward.1} parent=1 // pred_check_branch
      %946 = sbr.rel (0) target = $region89
    $region88: #{ntm_forward.1} parent=1 // pred_region
      %948 = dma.done [#allocation9], 32
    $region89: #{ntm_forward.1} parent=1 // pred_fallthru
      _
    // Predicated region
    $region90: #{ntm_forward.1} parent=1 // pred_check
      _
    $region91: #{ntm_forward.1} parent=1 // pred_check_branch
      %950 = sbr.rel (0) target = $region93
    $region92: #{ntm_forward.1} parent=1 // pred_region
      %952 = dma.done [#allocation9], 32
    $region93: #{ntm_forward.1} parent=1 // pred_fallthru
      _
    // Predicated region
    $region94: #{ntm_forward.1} parent=1 // pred_check
      _
    $region95: #{ntm_forward.1} parent=1 // pred_check_branch
      %954 = sbr.rel (0) target = $region97
    $region96: #{ntm_forward.1} parent=1 // pred_region
      %956 = dma.done [#allocation12], 32
    $region97: #{ntm_forward.1} parent=1 // pred_fallthru
      _
    // Predicated region
    $region98: #{ntm_forward.1} parent=1 // pred_check
      _
    $region99: #{ntm_forward.1} parent=1 // pred_check_branch
      %958 = sbr.rel (0) target = $region101
    $region100: #{ntm_forward.1} parent=1 // pred_region
      %960 = dma.done [#allocation12], 32
    $region101: #{ntm_forward.1} parent=1 // pred_fallthru
      _
    // Predicated region
    $region102: #{ntm_forward.1} parent=1 // pred_check
      _
    $region103: #{ntm_forward.1} parent=1 // pred_check_branch
      %962 = sbr.rel (0) target = $region105
    $region104: #{ntm_forward.1} parent=1 // pred_region
      _
    $region105: #{ntm_forward.1} parent=1 // pred_fallthru
      _
    %963 = vsyncpa [#allocation3], 1
    %964 = vsyncpa [#allocation6], 1
    %965 = vsyncpa [#allocation4], 1
    %966 = vsyncpa [#allocation9], 1
    %967 = vsyncpa [#allocation12], 1

</llo_original>
